<compile_context>
chip_gen: v7x
topology: tpu7x:2x2x1
jax: 0.10.0
libtpu: 0.0.40
codegen_flags: <defaults>
</compile_context>

<pallas_src>
import functools

import numpy as np
import jax
import jax.numpy as jnp
from jax.experimental import pallas as pl
from jax.experimental.pallas import tpu as pltpu


def _graph_editer_kernel(bk_ref, at_ref, gumbel_ref, ct_ref, logp_ref, *, num_sample):
    n = bk_ref.shape[0]
    bk = bk_ref[...]                                          # (n, n) f32

    # logsumexp over dim 0 (per column), matching torch.softmax(Bk, dim=0)
    col_max = jnp.max(bk, axis=0, keepdims=True)              # (1, n)
    lse = col_max + jnp.log(jnp.sum(jnp.exp(bk - col_max), axis=0, keepdims=True))
    sum_lse = jnp.sum(lse)                                    # scalar, cheap to keep live

    # Perturbed log-weights: row i of (bk - lse) are the (unnormalized) log
    # multinomial weights for node i; + Gumbel noise -> top-k == sampling w/o
    # replacement.  `bk` is deliberately not kept live past this point.
    pert = (bk - lse) + gumbel_ref[...]
    del bk

    lane = jax.lax.broadcasted_iota(jnp.int32, (n, n), 1)

    def select_one(pert, m):
        # one selection per row: argmax along lanes (lowest lane wins ties)
        row_max = jnp.max(pert, axis=1, keepdims=True)                       # XLU
        sel = jnp.min(jnp.where(pert >= row_max, lane, n), axis=1, keepdims=True)
        hit = lane == sel                                                    # one-hot along lanes
        m = jnp.logical_or(m, hit)                                           # boolean mask
        pert = jnp.where(hit, jnp.float32(-1e30), pert)                      # remove w/o replacement
        return pert, m

    m = jnp.zeros((n, n), jnp.bool_)          # m[i, j] = 1 iff j in S[i, :]  (== M^T)
    if num_sample <= 8:
        # small static trip-count -> plain unroll
        for _ in range(num_sample):
            pert, m = select_one(pert, m)
    else:
        # bound live ranges for larger sample counts
        pert, m = jax.lax.fori_loop(
            0, num_sample, lambda t, c: select_one(*c), (pert, m), unroll=True)

    # C^T: flip sampled entries of A^T  (where M^T == 1:  1 - A^T, else A^T)
    a_t = at_ref[...]
    ct_ref[...] = jnp.where(m, 1.0 - a_t, a_t)

    # log_p = sum_{i,t} Bk[S[i,t], i] - sum_i lse_i
    #       = sum(M^T * Bk^T) - sum(lse)      (reference indexes Bk transposed)
    bk_t = bk_ref[...].T                                      # re-read + XLU transpose
    logp_ref[0, 0] = jnp.sum(jnp.where(m, bk_t, 0.0)) - sum_lse


def graph_editer_forward(B, edge_index, n, num_sample, k, noise_key):
    """Pallas implementation of Graph_Editer.forward.

    Returns (edge_index_out, log_p, C_T) -- C^T returned for verification."""
    # TODO(synk): pad Bk / A^T to multiples of (8, 128) for non-aligned n.
    assert n % 128 == 0, "kernel assumes lane-aligned n (multiple of 128)"

    Bk = B[k].astype(jnp.float32)

    # Glue: dense adjacency, built directly transposed (swapped scatter indices)
    # like to_dense_adj(edge_index, max_num_nodes=n)[0].T -- no XLA transpose.
    A_T = jnp.zeros((n, n), jnp.float32).at[edge_index[1], edge_index[0]].set(1.0)

    # Gumbel noise for the top-k sampling (deterministic given the key).
    gumbel = jax.random.gumbel(noise_key, (n, n), dtype=jnp.float32)

    kernel = functools.partial(_graph_editer_kernel, num_sample=num_sample)
    C_T, log_p = pl.pallas_call(
        kernel,
        out_shape=[
            jax.ShapeDtypeStruct((n, n), jnp.float32),   # C^T
            jax.ShapeDtypeStruct((1, 1), jnp.float32),   # log_p
        ],
        in_specs=[
            pl.BlockSpec(memory_space=pltpu.MemorySpace.VMEM),   # Bk
            pl.BlockSpec(memory_space=pltpu.MemorySpace.VMEM),   # A^T
            pl.BlockSpec(memory_space=pltpu.MemorySpace.VMEM),   # Gumbel noise
        ],
        out_specs=[
            pl.BlockSpec(memory_space=pltpu.MemorySpace.VMEM),   # C^T
            pl.BlockSpec(memory_space=pltpu.MemorySpace.SMEM),   # log_p scalar
        ],
    )(Bk, A_T, gumbel)

    # Glue: dense_to_sparse(C)[0] (variable-length -> eager, outside the kernel).
    # Extract edges from C^T directly (no transpose back); the edge SET is
    # identical to dense_to_sparse(C)[0], only the listing order differs.
    ct_rows, ct_cols = jnp.nonzero(C_T)
    edge_index_out = jnp.stack([ct_cols, ct_rows], axis=0)
    return edge_index_out, log_p[0, 0], C_T


if __name__ == "__main__":
    K, n, num_sample, k = 3, 128, 4, 1
    num_edges = 512

    key = jax.random.PRNGKey(0)
    kB, kE, kG = jax.random.split(key, 3)

    # Deterministic "parameter" init: nn.init.uniform_ -> U(0, 1)
    B = jax.random.uniform(kB, (K, n, n), dtype=jnp.float32)
    # Small random directed graph
    edge_index = jax.random.randint(kE, (2, num_edges), 0, n, dtype=jnp.int32)

    edge_index_out, log_p, C_T = graph_editer_forward(B, edge_index, n, num_sample, k, kG)
    jax.block_until_ready((edge_index_out, log_p, C_T))

    # ---- lightweight correctness checks against the math of the reference ----
    A_np = np.zeros((n, n), np.float32)
    A_np[np.asarray(edge_index[0]), np.asarray(edge_index[1])] = 1.0
    C_np = np.asarray(C_T).T
    Bk_np = np.asarray(B[k])

    # C must be {0,1}; flipped entries define M
    assert set(np.unique(C_np)).issubset({0.0, 1.0})
    M = (C_np != A_np).astype(np.float32)
    # exactly num_sample samples per column (per-row sampling w/o replacement -> column i of M)
    assert np.all(M.sum(axis=0) == num_sample)
    # log_p consistency:  sum(M * Bk) - sum(logsumexp(Bk, dim=0))
    lse = np.log(np.exp(Bk_np - Bk_np.max(0, keepdims=True)).sum(0)) + Bk_np.max(0)
    log_p_ref = float((M * Bk_np).sum() - lse.sum())
    np.testing.assert_allclose(float(log_p), log_p_ref, rtol=1e-5, atol=1e-3)

    # edge_index_out is exactly the edge set of C
    edges_from_C = set(zip(*map(lambda x: x.tolist(), np.nonzero(C_np))))
    edges_out = set(zip(np.asarray(edge_index_out[0]).tolist(),
                        np.asarray(edge_index_out[1]).tolist()))
    assert edges_from_C == edges_out

    print("KERNEL_OK")
</pallas_src>

<mosaic_0001>
module attributes {stable_mosaic.version = 11 : i64} {
  func.func @_graph_editer_kernel(%arg0: memref<128x128xf32, #tpu.memory_space<vmem>>, %arg1: memref<128x128xf32, #tpu.memory_space<vmem>>, %arg2: memref<128x128xf32, #tpu.memory_space<vmem>>, %arg3: memref<128x128xf32, #tpu.memory_space<vmem>>, %arg4: memref<1x1xf32, #tpu.memory_space<smem>>) attributes {dimension_semantics = [], scalar_prefetch = 0 : i64, scratch_operands = 0 : i64, tpu.core_type = #tpu.core_type<tc>} {
    %c0 = arith.constant 0 : index
    %c0_0 = arith.constant 0 : index
    %0 = vector.load %arg0[%c0, %c0_0] : memref<128x128xf32, #tpu.memory_space<vmem>>, vector<128x128xf32>
    %cst = arith.constant dense<0xFF800000> : vector<128xf32>
    %1 = vector.multi_reduction <maximumf>, %0, %cst [0] : vector<128x128xf32> to vector<128xf32>
    %2 = vector.shape_cast %1 : vector<128xf32> to vector<1x128xf32>
    %3 = vector.broadcast %2 : vector<1x128xf32> to vector<128x128xf32>
    %4 = arith.subf %0, %3 : vector<128x128xf32>
    %5 = math.exp %4 : vector<128x128xf32>
    %cst_1 = arith.constant dense<0.000000e+00> : vector<128xf32>
    %6 = vector.multi_reduction <add>, %5, %cst_1 [0] : vector<128x128xf32> to vector<128xf32>
    %7 = vector.shape_cast %6 : vector<128xf32> to vector<1x128xf32>
    %8 = math.log %7 : vector<1x128xf32>
    %9 = arith.addf %2, %8 : vector<1x128xf32>
    %10 = vector.shape_cast %9 : vector<1x128xf32> to vector<1x1x128xf32>
    %cst_2 = arith.constant dense<0.000000e+00> : vector<1xf32>
    %11 = vector.multi_reduction <add>, %10, %cst_2 [1, 2] : vector<1x1x128xf32> to vector<1xf32>
    %12 = vector.shape_cast %11 : vector<1xf32> to vector<1x1x1xf32>
    %13 = vector.extract %12[0, 0, 0] : f32 from vector<1x1x1xf32>
    %14 = vector.broadcast %9 : vector<1x128xf32> to vector<128x128xf32>
    %15 = arith.subf %0, %14 : vector<128x128xf32>
    %c0_3 = arith.constant 0 : index
    %c0_4 = arith.constant 0 : index
    %16 = vector.load %arg2[%c0_3, %c0_4] : memref<128x128xf32, #tpu.memory_space<vmem>>, vector<128x128xf32>
    %17 = arith.addf %15, %16 : vector<128x128xf32>
    %18 = tpu.iota {dimensions = array<i32: 1>} : vector<128x128xi32>
    %false = arith.constant false
    %19 = vector.broadcast %false : i1 to vector<128x128xi1>
    %cst_5 = arith.constant dense<0xFF800000> : vector<128xf32>
    %20 = vector.multi_reduction <maximumf>, %17, %cst_5 [1] : vector<128x128xf32> to vector<128xf32>
    %21 = vector.shape_cast %20 : vector<128xf32> to vector<128x1xf32>
    %22 = vector.broadcast %21 : vector<128x1xf32> to vector<128x128xf32>
    %23 = arith.cmpf oge, %17, %22 : vector<128x128xf32>
    %c128_i32 = arith.constant 128 : i32
    %24 = vector.broadcast %c128_i32 : i32 to vector<128x128xi32>
    %25 = arith.select %23, %18, %24 : vector<128x128xi1>, vector<128x128xi32>
    %cst_6 = arith.constant dense<2147483647> : vector<128xi32>
    %26 = vector.multi_reduction <minsi>, %25, %cst_6 [1] : vector<128x128xi32> to vector<128xi32>
    %27 = vector.shape_cast %26 : vector<128xi32> to vector<128x1xi32>
    %28 = vector.broadcast %27 : vector<128x1xi32> to vector<128x128xi32>
    %29 = arith.cmpi eq, %18, %28 : vector<128x128xi32>
    %30 = arith.ori %19, %29 : vector<128x128xi1>
    %cst_7 = arith.constant -1.000000e+30 : f32
    %31 = vector.broadcast %cst_7 : f32 to vector<128x128xf32>
    %32 = arith.select %29, %31, %17 : vector<128x128xi1>, vector<128x128xf32>
    %cst_8 = arith.constant dense<0xFF800000> : vector<128xf32>
    %33 = vector.multi_reduction <maximumf>, %32, %cst_8 [1] : vector<128x128xf32> to vector<128xf32>
    %34 = vector.shape_cast %33 : vector<128xf32> to vector<128x1xf32>
    %35 = vector.broadcast %34 : vector<128x1xf32> to vector<128x128xf32>
    %36 = arith.cmpf oge, %32, %35 : vector<128x128xf32>
    %c128_i32_9 = arith.constant 128 : i32
    %37 = vector.broadcast %c128_i32_9 : i32 to vector<128x128xi32>
    %38 = arith.select %36, %18, %37 : vector<128x128xi1>, vector<128x128xi32>
    %cst_10 = arith.constant dense<2147483647> : vector<128xi32>
    %39 = vector.multi_reduction <minsi>, %38, %cst_10 [1] : vector<128x128xi32> to vector<128xi32>
    %40 = vector.shape_cast %39 : vector<128xi32> to vector<128x1xi32>
    %41 = vector.broadcast %40 : vector<128x1xi32> to vector<128x128xi32>
    %42 = arith.cmpi eq, %18, %41 : vector<128x128xi32>
    %43 = arith.ori %30, %42 : vector<128x128xi1>
    %cst_11 = arith.constant -1.000000e+30 : f32
    %44 = vector.broadcast %cst_11 : f32 to vector<128x128xf32>
    %45 = arith.select %42, %44, %32 : vector<128x128xi1>, vector<128x128xf32>
    %cst_12 = arith.constant dense<0xFF800000> : vector<128xf32>
    %46 = vector.multi_reduction <maximumf>, %45, %cst_12 [1] : vector<128x128xf32> to vector<128xf32>
    %47 = vector.shape_cast %46 : vector<128xf32> to vector<128x1xf32>
    %48 = vector.broadcast %47 : vector<128x1xf32> to vector<128x128xf32>
    %49 = arith.cmpf oge, %45, %48 : vector<128x128xf32>
    %c128_i32_13 = arith.constant 128 : i32
    %50 = vector.broadcast %c128_i32_13 : i32 to vector<128x128xi32>
    %51 = arith.select %49, %18, %50 : vector<128x128xi1>, vector<128x128xi32>
    %cst_14 = arith.constant dense<2147483647> : vector<128xi32>
    %52 = vector.multi_reduction <minsi>, %51, %cst_14 [1] : vector<128x128xi32> to vector<128xi32>
    %53 = vector.shape_cast %52 : vector<128xi32> to vector<128x1xi32>
    %54 = vector.broadcast %53 : vector<128x1xi32> to vector<128x128xi32>
    %55 = arith.cmpi eq, %18, %54 : vector<128x128xi32>
    %56 = arith.ori %43, %55 : vector<128x128xi1>
    %cst_15 = arith.constant -1.000000e+30 : f32
    %57 = vector.broadcast %cst_15 : f32 to vector<128x128xf32>
    %58 = arith.select %55, %57, %45 : vector<128x128xi1>, vector<128x128xf32>
    %cst_16 = arith.constant dense<0xFF800000> : vector<128xf32>
    %59 = vector.multi_reduction <maximumf>, %58, %cst_16 [1] : vector<128x128xf32> to vector<128xf32>
    %60 = vector.shape_cast %59 : vector<128xf32> to vector<128x1xf32>
    %61 = vector.broadcast %60 : vector<128x1xf32> to vector<128x128xf32>
    %62 = arith.cmpf oge, %58, %61 : vector<128x128xf32>
    %c128_i32_17 = arith.constant 128 : i32
    %63 = vector.broadcast %c128_i32_17 : i32 to vector<128x128xi32>
    %64 = arith.select %62, %18, %63 : vector<128x128xi1>, vector<128x128xi32>
    %cst_18 = arith.constant dense<2147483647> : vector<128xi32>
    %65 = vector.multi_reduction <minsi>, %64, %cst_18 [1] : vector<128x128xi32> to vector<128xi32>
    %66 = vector.shape_cast %65 : vector<128xi32> to vector<128x1xi32>
    %67 = vector.broadcast %66 : vector<128x1xi32> to vector<128x128xi32>
    %68 = arith.cmpi eq, %18, %67 : vector<128x128xi32>
    %69 = arith.ori %56, %68 : vector<128x128xi1>
    %c0_19 = arith.constant 0 : index
    %c0_20 = arith.constant 0 : index
    %70 = vector.load %arg1[%c0_19, %c0_20] : memref<128x128xf32, #tpu.memory_space<vmem>>, vector<128x128xf32>
    %cst_21 = arith.constant 1.000000e+00 : f32
    %71 = vector.broadcast %cst_21 : f32 to vector<128x128xf32>
    %72 = arith.subf %71, %70 : vector<128x128xf32>
    %73 = arith.select %69, %72, %70 : vector<128x128xi1>, vector<128x128xf32>
    %c0_22 = arith.constant 0 : index
    %c0_23 = arith.constant 0 : index
    %74 = vector.load %arg3[%c0_22, %c0_23] : memref<128x128xf32, #tpu.memory_space<vmem>>, vector<128x128xf32>
    tpu.vector_store %arg3[%c0_22, %c0_23], %73 {strides = array<i32>} : memref<128x128xf32, #tpu.memory_space<vmem>>, vector<128x128xf32>,
    %c0_24 = arith.constant 0 : index
    %c0_25 = arith.constant 0 : index
    %75 = vector.load %arg0[%c0_24, %c0_25] : memref<128x128xf32, #tpu.memory_space<vmem>>, vector<128x128xf32>
    %76 = tpu.transpose %75, [1, 0] : vector<128x128xf32> -> vector<128x128xf32>
    %cst_26 = arith.constant 0.000000e+00 : f32
    %77 = vector.broadcast %cst_26 : f32 to vector<128x128xf32>
    %78 = arith.select %69, %76, %77 : vector<128x128xi1>, vector<128x128xf32>
    %79 = vector.shape_cast %78 : vector<128x128xf32> to vector<1x128x128xf32>
    %cst_27 = arith.constant dense<0.000000e+00> : vector<1xf32>
    %80 = vector.multi_reduction <add>, %79, %cst_27 [1, 2] : vector<1x128x128xf32> to vector<1xf32>
    %81 = vector.shape_cast %80 : vector<1xf32> to vector<1x1x1xf32>
    %82 = vector.extract %81[0, 0, 0] : f32 from vector<1x1x1xf32>
    %83 = arith.subf %82, %13 : f32
    %c0_28 = arith.constant 0 : index
    %c0_29 = arith.constant 0 : index
    %84 = memref.load %arg4[%c0_28, %c0_29] : memref<1x1xf32, #tpu.memory_space<smem>>
    memref.store %83, %arg4[%c0_28, %c0_29] : memref<1x1xf32, #tpu.memory_space<smem>>
    return
  }
}

</mosaic_0001>

<llo_original>
// kernel: tpu_custom_call.1
$region0: #{tpu_custom_call.1}
  #allocation0 [shape = 'u32[]', space=smem, size = 0x4, offset = 0x4, fixed_abs, tag = 'smem constant byte address 0x4 - core index']
  #allocation1 [shape = 'u32[144,128]{1,0:T(1,128)}', space=vmem, size = 0x12000, scoped, tag = 'internal scratch']
  %s0 = inlined_call_operand.hbm [shape: f32[128,128], index: 0, kind: input, shape index: {}]
  %s1 = inlined_call_operand.hbm [shape: f32[128,128], index: 1, kind: input, shape index: {}]
  %s2 = inlined_call_operand.hbm [shape: f32[128,128], index: 2, kind: input, shape index: {}]
  %s3 = inlined_call_operand.hbm [shape: f32[128,128], index: 3, kind: output, shape index: {0}]
  %s4 = inlined_call_operand.hbm [shape: f32[1,1], index: 4, kind: output, shape index: {1}]
  %5 = xla_tuple %s3, %s4
  %s6 = sld [smem:[#allocation0]]
  $region42: #{tpu_custom_call.1} parent=0
    _
  %s8 = ssub.s32 1, %s6
  %s9 = scalar_select 0, %s8, %s6
  $region1: #{tpu_custom_call.1} parent=0
    #allocation2 [shape = 'u8[65536]{0}', space=vmem, size = 0x10000, scoped, tag = 'input window, operand 0, single buffered']
    #allocation3 [shape = 's32[1]{0}', space=sflag, size = 0x4, scoped, tag = 'scoped memory for tpu_custom_call.1']
    #allocation4 [shape = 's32[1]{0}', space=sflag, size = 0x4, scoped, tag = 'scoped memory for tpu_custom_call.1']
    #allocation5 [shape = 's32[1]{0}', space=sflag, size = 0x4, scoped, tag = 'scoped memory for tpu_custom_call.1']
    #allocation6 [shape = 'u8[65536]{0}', space=vmem, size = 0x10000, scoped, tag = 'input window, operand 1, single buffered']
    #allocation7 [shape = 's32[1]{0}', space=sflag, size = 0x4, scoped, tag = 'scoped memory for tpu_custom_call.1']
    #allocation8 [shape = 'u8[65536]{0}', space=vmem, size = 0x10000, scoped, tag = 'input window, operand 2, single buffered']
    #allocation9 [shape = 'u8[65536]{0}', space=vmem, size = 0x10000, scoped, tag = 'output window, operand 0, single buffered']
    #allocation10 [shape = 'u8[512]{0}', space=smem, size = 0x200, scoped, tag = 'output window, operand 1, single buffered']
    %10 = vsyncpa [#allocation3], 0
    %11 = vsyncpa [#allocation7], 0
    %12 = vsyncpa [#allocation4], 0
    %13 = vsyncpa [#allocation5], 0
    // Predicated region
    $region2: #{tpu_custom_call.1} parent=1 // pred_check
      _
    $region3: #{tpu_custom_call.1} parent=1 // pred_check_branch
      %15 = sbr.rel (0) target = $region5
    $region4: #{tpu_custom_call.1} parent=1 // pred_region
      %s17 = ssub.s32 2048, 2048
      %18 = vsyncadd [#allocation3], %s17
      %s19 = sshll.u32 [#allocation2], 4
      %s20 = int_to_ptr.vmem [resolvable:$true] %s19
      %25 = dma.hbm_to_vmem [thread:$0]  %s0, 2048, %s20, [#allocation3], 128, 128, 8
    $region5: #{tpu_custom_call.1} parent=1 // pred_fallthru
      _
    // Predicated region
    $region6: #{tpu_custom_call.1} parent=1 // pred_check
      _
    $region7: #{tpu_custom_call.1} parent=1 // pred_check_branch
      %27 = sbr.rel (0) target = $region9
    $region8: #{tpu_custom_call.1} parent=1 // pred_region
      %s29 = ssub.s32 2048, 2048
      %30 = vsyncadd [#allocation7], %s29
      %s31 = sshll.u32 [#allocation6], 4
      %s32 = int_to_ptr.vmem [resolvable:$true] %s31
      %37 = dma.hbm_to_vmem [thread:$0]  %s1, 2048, %s32, [#allocation7], 128, 128, 8
    $region9: #{tpu_custom_call.1} parent=1 // pred_fallthru
      _
    // Predicated region
    $region10: #{tpu_custom_call.1} parent=1 // pred_check
      _
    $region11: #{tpu_custom_call.1} parent=1 // pred_check_branch
      %39 = sbr.rel (0) target = $region13
    $region12: #{tpu_custom_call.1} parent=1 // pred_region
      %s41 = ssub.s32 2048, 2048
      %42 = vsyncadd [#allocation7], %s41
      %s43 = sshll.u32 [#allocation8], 4
      %s44 = int_to_ptr.vmem [resolvable:$true] %s43
      %49 = dma.hbm_to_vmem [thread:$0]  %s2, 2048, %s44, [#allocation7], 128, 128, 8
    $region13: #{tpu_custom_call.1} parent=1 // pred_fallthru
      _
    // Predicated region
    $region14: #{tpu_custom_call.1} parent=1 // pred_check
      _
    $region15: #{tpu_custom_call.1} parent=1 // pred_check_branch
      %51 = sbr.rel (0) target = $region17
    $region16: #{tpu_custom_call.1} parent=1 // pred_region
      %52 = dma.done [#allocation3], 2048
    $region17: #{tpu_custom_call.1} parent=1 // pred_fallthru
      _
    // Predicated region
    $region18: #{tpu_custom_call.1} parent=1 // pred_check
      _
    $region19: #{tpu_custom_call.1} parent=1 // pred_check_branch
      %54 = sbr.rel (0) target = $region21
    $region20: #{tpu_custom_call.1} parent=1 // pred_region
      %55 = dma.done [#allocation7], 2048
    $region21: #{tpu_custom_call.1} parent=1 // pred_fallthru
      _
    // Predicated region
    $region22: #{tpu_custom_call.1} parent=1 // pred_check
      _
    $region23: #{tpu_custom_call.1} parent=1 // pred_check_branch
      %57 = sbr.rel (0) target = $region25
    $region24: #{tpu_custom_call.1} parent=1 // pred_region
      %58 = dma.done [#allocation7], 2048
    $region25: #{tpu_custom_call.1} parent=1 // pred_fallthru
      _
    %v59 = vld [vmem:[#allocation2] sm:$0xff]
    %v60 = vld [vmem:[#allocation2 + $0x8] sm:$0xff]
    %v61 = vld [vmem:[#allocation2 + $0x10] sm:$0xff]
    %v62 = vld [vmem:[#allocation2 + $0x18] sm:$0xff]
    %v63 = vld [vmem:[#allocation2 + $0x20] sm:$0xff]
    %v64 = vld [vmem:[#allocation2 + $0x28] sm:$0xff]
    %v65 = vld [vmem:[#allocation2 + $0x30] sm:$0xff]
    %v66 = vld [vmem:[#allocation2 + $0x38] sm:$0xff]
    %v67 = vld [vmem:[#allocation2 + $0x40] sm:$0xff]
    %v68 = vld [vmem:[#allocation2 + $0x48] sm:$0xff]
    %v69 = vld [vmem:[#allocation2 + $0x50] sm:$0xff]
    %v70 = vld [vmem:[#allocation2 + $0x58] sm:$0xff]
    %v71 = vld [vmem:[#allocation2 + $0x60] sm:$0xff]
    %v72 = vld [vmem:[#allocation2 + $0x68] sm:$0xff]
    %v73 = vld [vmem:[#allocation2 + $0x70] sm:$0xff]
    %v74 = vld [vmem:[#allocation2 + $0x78] sm:$0xff]
    %v75 = vmax.f32 %v59, %v63
    %v76 = vmax.f32 %v60, %v64
    %v77 = vmax.f32 %v61, %v65
    %v78 = vmax.f32 %v62, %v66
    %v79 = vmax.f32 %v75, %v67
    %v80 = vmax.f32 %v76, %v68
    %v81 = vmax.f32 %v77, %v69
    %v82 = vmax.f32 %v78, %v70
    %v83 = vmax.f32 %v79, %v71
    %v84 = vmax.f32 %v80, %v72
    %v85 = vmax.f32 %v81, %v73
    %v86 = vmax.f32 %v82, %v74
    %v87 = vmax.f32 %v83, %v84
    %v88 = vmax.f32 %v85, %v86
    %v89 = vmax.f32 %v87, %v88
    %v90 = vrot.slane %v89, 4
    %v91 = vmax.f32 %v89, %v90
    %v92 = vrot.slane %v91, 2
    %v93 = vmax.f32 %v91, %v92
    %v94 = vrot.slane %v93, 1
    %v95 = vmax.f32 %v93, %v94
    %v96 = vsub.f32 %v59, %v95
    %v97 = vsub.f32 %v60, %v95
    %v98 = vsub.f32 %v61, %v95
    %v99 = vsub.f32 %v62, %v95
    %v100 = vsub.f32 %v63, %v95
    %v101 = vsub.f32 %v64, %v95
    %v102 = vsub.f32 %v65, %v95
    %v103 = vsub.f32 %v66, %v95
    %v104 = vsub.f32 %v67, %v95
    %v105 = vsub.f32 %v68, %v95
    %v106 = vsub.f32 %v69, %v95
    %v107 = vsub.f32 %v70, %v95
    %v108 = vsub.f32 %v71, %v95
    %v109 = vsub.f32 %v72, %v95
    %v110 = vsub.f32 %v73, %v95
    %v111 = vsub.f32 %v74, %v95
    %v112 = vmul.f32 %v96, 1.442695
    %v113 = vpow.pop %v112
    %v114 = vmul.f32 %v97, 1.442695
    %v115 = vpow.pop %v114
    %v116 = vmul.f32 %v98, 1.442695
    %v117 = vpow.pop %v116
    %v118 = vmul.f32 %v99, 1.442695
    %v119 = vpow.pop %v118
    %v120 = vmul.f32 %v100, 1.442695
    %v121 = vpow.pop %v120
    %v122 = vmul.f32 %v101, 1.442695
    %v123 = vpow.pop %v122
    %v124 = vmul.f32 %v102, 1.442695
    %v125 = vpow.pop %v124
    %v126 = vmul.f32 %v103, 1.442695
    %v127 = vpow.pop %v126
    %v128 = vmul.f32 %v104, 1.442695
    %v129 = vpow.pop %v128
    %v130 = vmul.f32 %v105, 1.442695
    %v131 = vpow.pop %v130
    %v132 = vmul.f32 %v106, 1.442695
    %v133 = vpow.pop %v132
    %v134 = vmul.f32 %v107, 1.442695
    %v135 = vpow.pop %v134
    %v136 = vmul.f32 %v108, 1.442695
    %v137 = vpow.pop %v136
    %v138 = vmul.f32 %v109, 1.442695
    %v139 = vpow.pop %v138
    %v140 = vmul.f32 %v110, 1.442695
    %v141 = vpow.pop %v140
    %v142 = vmul.f32 %v111, 1.442695
    %v143 = vpow.pop %v142
    %v144 = vadd.f32 %v113, %v115
    %v145 = vadd.f32 %v144, %v117
    %v146 = vadd.f32 %v145, %v119
    %v147 = vadd.f32 %v146, %v121
    %v148 = vadd.f32 %v147, %v123
    %v149 = vadd.f32 %v148, %v125
    %v150 = vadd.f32 %v149, %v127
    %v151 = vadd.f32 %v150, %v129
    %v152 = vadd.f32 %v151, %v131
    %v153 = vadd.f32 %v152, %v133
    %v154 = vadd.f32 %v153, %v135
    %v155 = vadd.f32 %v154, %v137
    %v156 = vadd.f32 %v155, %v139
    %v157 = vadd.f32 %v156, %v141
    %v158 = vadd.f32 %v157, %v143
    %v159 = vrot.slane %v158, 4
    %v160 = vadd.f32 %v158, %v159
    %v161 = vrot.slane %v160, 2
    %v162 = vadd.f32 %v160, %v161
    %v163 = vrot.slane %v162, 1
    %v164 = vadd.f32 %v162, %v163
    %v165 = vlog2.pop %v164
    %v166 = vmul.f32 %v165, 0.6931472
    %v167 = vadd.f32 %v95, %v166
    %vm168 = vcmask 1040384
    %v169 = vsel %vm168, %v167, 0.0
    %170 = vadd.xlane.f32.xlu0 %v169
    %v171 = vpop.xlane.xlu0 %170
    %v172 = vrot.slane %v171, 4
    %v173 = vadd.f32 %v171, %v172
    %v174 = vrot.slane %v173, 2
    %v175 = vadd.f32 %v173, %v174
    %v176 = vrot.slane %v175, 1
    %v177 = vadd.f32 %v175, %v176
    %s178 = vtos %v177
    %v179 = vsub.f32 %v59, %v167
    %v180 = vsub.f32 %v60, %v167
    %v181 = vsub.f32 %v61, %v167
    %v182 = vsub.f32 %v62, %v167
    %v183 = vsub.f32 %v63, %v167
    %v184 = vsub.f32 %v64, %v167
    %v185 = vsub.f32 %v65, %v167
    %v186 = vsub.f32 %v66, %v167
    %v187 = vsub.f32 %v67, %v167
    %v188 = vsub.f32 %v68, %v167
    %v189 = vsub.f32 %v69, %v167
    %v190 = vsub.f32 %v70, %v167
    %v191 = vsub.f32 %v71, %v167
    %v192 = vsub.f32 %v72, %v167
    %v193 = vsub.f32 %v73, %v167
    %v194 = vsub.f32 %v74, %v167
    %v195 = vld [vmem:[#allocation8] sm:$0xff]
    %v196 = vld [vmem:[#allocation8 + $0x8] sm:$0xff]
    %v197 = vld [vmem:[#allocation8 + $0x10] sm:$0xff]
    %v198 = vld [vmem:[#allocation8 + $0x18] sm:$0xff]
    %v199 = vld [vmem:[#allocation8 + $0x20] sm:$0xff]
    %v200 = vld [vmem:[#allocation8 + $0x28] sm:$0xff]
    %v201 = vld [vmem:[#allocation8 + $0x30] sm:$0xff]
    %v202 = vld [vmem:[#allocation8 + $0x38] sm:$0xff]
    %v203 = vld [vmem:[#allocation8 + $0x40] sm:$0xff]
    %v204 = vld [vmem:[#allocation8 + $0x48] sm:$0xff]
    %v205 = vld [vmem:[#allocation8 + $0x50] sm:$0xff]
    %v206 = vld [vmem:[#allocation8 + $0x58] sm:$0xff]
    %v207 = vld [vmem:[#allocation8 + $0x60] sm:$0xff]
    %v208 = vld [vmem:[#allocation8 + $0x68] sm:$0xff]
    %v209 = vld [vmem:[#allocation8 + $0x70] sm:$0xff]
    %v210 = vld [vmem:[#allocation8 + $0x78] sm:$0xff]
    %v211 = vadd.f32 %v179, %v195
    %v212 = vadd.f32 %v180, %v196
    %v213 = vadd.f32 %v181, %v197
    %v214 = vadd.f32 %v182, %v198
    %v215 = vadd.f32 %v183, %v199
    %v216 = vadd.f32 %v184, %v200
    %v217 = vadd.f32 %v185, %v201
    %v218 = vadd.f32 %v186, %v202
    %v219 = vadd.f32 %v187, %v203
    %v220 = vadd.f32 %v188, %v204
    %v221 = vadd.f32 %v189, %v205
    %v222 = vadd.f32 %v190, %v206
    %v223 = vadd.f32 %v191, %v207
    %v224 = vadd.f32 %v192, %v208
    %v225 = vadd.f32 %v193, %v209
    %v226 = vadd.f32 %v194, %v210
    %v227 = vlaneseq
    %v228 = vand.u32 %v227, 127
    %229 = vmax.xlane.f32.xlu0 %v211
    %v230 = vpop.xlane.xlu0 %229
    %231 = vmax.xlane.f32.xlu0 %v212
    %v232 = vpop.xlane.xlu0 %231
    %233 = vmax.xlane.f32.xlu0 %v213
    %v234 = vpop.xlane.xlu0 %233
    %235 = vmax.xlane.f32.xlu0 %v214
    %v236 = vpop.xlane.xlu0 %235
    %237 = vmax.xlane.f32.xlu0 %v215
    %v238 = vpop.xlane.xlu0 %237
    %239 = vmax.xlane.f32.xlu0 %v216
    %v240 = vpop.xlane.xlu0 %239
    %241 = vmax.xlane.f32.xlu0 %v217
    %v242 = vpop.xlane.xlu0 %241
    %243 = vmax.xlane.f32.xlu0 %v218
    %v244 = vpop.xlane.xlu0 %243
    %245 = vmax.xlane.f32.xlu0 %v219
    %v246 = vpop.xlane.xlu0 %245
    %247 = vmax.xlane.f32.xlu0 %v220
    %v248 = vpop.xlane.xlu0 %247
    %249 = vmax.xlane.f32.xlu0 %v221
    %v250 = vpop.xlane.xlu0 %249
    %251 = vmax.xlane.f32.xlu0 %v222
    %v252 = vpop.xlane.xlu0 %251
    %253 = vmax.xlane.f32.xlu0 %v223
    %v254 = vpop.xlane.xlu0 %253
    %255 = vmax.xlane.f32.xlu0 %v224
    %v256 = vpop.xlane.xlu0 %255
    %257 = vmax.xlane.f32.xlu0 %v225
    %v258 = vpop.xlane.xlu0 %257
    %259 = vmax.xlane.f32.xlu0 %v226
    %v260 = vpop.xlane.xlu0 %259
    %vm261 = vcmp.ge.f32.partialorder %v211, %v230
    %vm262 = vcmp.ge.f32.partialorder %v212, %v232
    %vm263 = vcmp.ge.f32.partialorder %v213, %v234
    %vm264 = vcmp.ge.f32.partialorder %v214, %v236
    %vm265 = vcmp.ge.f32.partialorder %v215, %v238
    %vm266 = vcmp.ge.f32.partialorder %v216, %v240
    %vm267 = vcmp.ge.f32.partialorder %v217, %v242
    %vm268 = vcmp.ge.f32.partialorder %v218, %v244
    %vm269 = vcmp.ge.f32.partialorder %v219, %v246
    %vm270 = vcmp.ge.f32.partialorder %v220, %v248
    %vm271 = vcmp.ge.f32.partialorder %v221, %v250
    %vm272 = vcmp.ge.f32.partialorder %v222, %v252
    %vm273 = vcmp.ge.f32.partialorder %v223, %v254
    %vm274 = vcmp.ge.f32.partialorder %v224, %v256
    %vm275 = vcmp.ge.f32.partialorder %v225, %v258
    %vm276 = vcmp.ge.f32.partialorder %v226, %v260
    %v277 = vsel %vm261, %v228, 128
    %v278 = vsel %vm262, %v228, 128
    %v279 = vsel %vm263, %v228, 128
    %v280 = vsel %vm264, %v228, 128
    %v281 = vsel %vm265, %v228, 128
    %v282 = vsel %vm266, %v228, 128
    %v283 = vsel %vm267, %v228, 128
    %v284 = vsel %vm268, %v228, 128
    %v285 = vsel %vm269, %v228, 128
    %v286 = vsel %vm270, %v228, 128
    %v287 = vsel %vm271, %v228, 128
    %v288 = vsel %vm272, %v228, 128
    %v289 = vsel %vm273, %v228, 128
    %v290 = vsel %vm274, %v228, 128
    %v291 = vsel %vm275, %v228, 128
    %v292 = vsel %vm276, %v228, 128
    %v293 = vand.u32 %v277, 65535
    %v294 = vshra.s32 %v277, 16
    %v295 = vcvt.s32.f32 %v293
    %v296 = vcvt.s32.f32 %v294
    %297 = vmin.xlane.f32.xlu0 %v296
    %v298 = vpop.xlane.xlu0 %297
    %vm299 = vcmp.eq.f32.partialorder %v296, %v298
    %v300 = vsel %vm299, %v295, inf
    %301 = vmin.xlane.f32.xlu0 %v300
    %v302 = vpop.xlane.xlu0 %301
    %v303 = vcvt.f32.s32 %v302
    %v304 = vcvt.f32.s32 %v298
    %v305 = vshll.u32 %v304, 16
    %v306 = vadd.s32 %v305, %v303
    %v307 = vand.u32 %v278, 65535
    %v308 = vshra.s32 %v278, 16
    %v309 = vcvt.s32.f32 %v307
    %v310 = vcvt.s32.f32 %v308
    %311 = vmin.xlane.f32.xlu0 %v310
    %v312 = vpop.xlane.xlu0 %311
    %vm313 = vcmp.eq.f32.partialorder %v310, %v312
    %v314 = vsel %vm313, %v309, inf
    %315 = vmin.xlane.f32.xlu0 %v314
    %v316 = vpop.xlane.xlu0 %315
    %v317 = vcvt.f32.s32 %v316
    %v318 = vcvt.f32.s32 %v312
    %v319 = vshll.u32 %v318, 16
    %v320 = vadd.s32 %v319, %v317
    %v321 = vand.u32 %v279, 65535
    %v322 = vshra.s32 %v279, 16
    %v323 = vcvt.s32.f32 %v321
    %v324 = vcvt.s32.f32 %v322
    %325 = vmin.xlane.f32.xlu0 %v324
    %v326 = vpop.xlane.xlu0 %325
    %vm327 = vcmp.eq.f32.partialorder %v324, %v326
    %v328 = vsel %vm327, %v323, inf
    %329 = vmin.xlane.f32.xlu0 %v328
    %v330 = vpop.xlane.xlu0 %329
    %v331 = vcvt.f32.s32 %v330
    %v332 = vcvt.f32.s32 %v326
    %v333 = vshll.u32 %v332, 16
    %v334 = vadd.s32 %v333, %v331
    %v335 = vand.u32 %v280, 65535
    %v336 = vshra.s32 %v280, 16
    %v337 = vcvt.s32.f32 %v335
    %v338 = vcvt.s32.f32 %v336
    %339 = vmin.xlane.f32.xlu0 %v338
    %v340 = vpop.xlane.xlu0 %339
    %vm341 = vcmp.eq.f32.partialorder %v338, %v340
    %v342 = vsel %vm341, %v337, inf
    %343 = vmin.xlane.f32.xlu0 %v342
    %v344 = vpop.xlane.xlu0 %343
    %v345 = vcvt.f32.s32 %v344
    %v346 = vcvt.f32.s32 %v340
    %v347 = vshll.u32 %v346, 16
    %v348 = vadd.s32 %v347, %v345
    %v349 = vand.u32 %v281, 65535
    %v350 = vshra.s32 %v281, 16
    %v351 = vcvt.s32.f32 %v349
    %v352 = vcvt.s32.f32 %v350
    %353 = vmin.xlane.f32.xlu0 %v352
    %v354 = vpop.xlane.xlu0 %353
    %vm355 = vcmp.eq.f32.partialorder %v352, %v354
    %v356 = vsel %vm355, %v351, inf
    %357 = vmin.xlane.f32.xlu0 %v356
    %v358 = vpop.xlane.xlu0 %357
    %v359 = vcvt.f32.s32 %v358
    %v360 = vcvt.f32.s32 %v354
    %v361 = vshll.u32 %v360, 16
    %v362 = vadd.s32 %v361, %v359
    %v363 = vand.u32 %v282, 65535
    %v364 = vshra.s32 %v282, 16
    %v365 = vcvt.s32.f32 %v363
    %v366 = vcvt.s32.f32 %v364
    %367 = vmin.xlane.f32.xlu0 %v366
    %v368 = vpop.xlane.xlu0 %367
    %vm369 = vcmp.eq.f32.partialorder %v366, %v368
    %v370 = vsel %vm369, %v365, inf
    %371 = vmin.xlane.f32.xlu0 %v370
    %v372 = vpop.xlane.xlu0 %371
    %v373 = vcvt.f32.s32 %v372
    %v374 = vcvt.f32.s32 %v368
    %v375 = vshll.u32 %v374, 16
    %v376 = vadd.s32 %v375, %v373
    %v377 = vand.u32 %v283, 65535
    %v378 = vshra.s32 %v283, 16
    %v379 = vcvt.s32.f32 %v377
    %v380 = vcvt.s32.f32 %v378
    %381 = vmin.xlane.f32.xlu0 %v380
    %v382 = vpop.xlane.xlu0 %381
    %vm383 = vcmp.eq.f32.partialorder %v380, %v382
    %v384 = vsel %vm383, %v379, inf
    %385 = vmin.xlane.f32.xlu0 %v384
    %v386 = vpop.xlane.xlu0 %385
    %v387 = vcvt.f32.s32 %v386
    %v388 = vcvt.f32.s32 %v382
    %v389 = vshll.u32 %v388, 16
    %v390 = vadd.s32 %v389, %v387
    %v391 = vand.u32 %v284, 65535
    %v392 = vshra.s32 %v284, 16
    %v393 = vcvt.s32.f32 %v391
    %v394 = vcvt.s32.f32 %v392
    %395 = vmin.xlane.f32.xlu0 %v394
    %v396 = vpop.xlane.xlu0 %395
    %vm397 = vcmp.eq.f32.partialorder %v394, %v396
    %v398 = vsel %vm397, %v393, inf
    %399 = vmin.xlane.f32.xlu0 %v398
    %v400 = vpop.xlane.xlu0 %399
    %v401 = vcvt.f32.s32 %v400
    %v402 = vcvt.f32.s32 %v396
    %v403 = vshll.u32 %v402, 16
    %v404 = vadd.s32 %v403, %v401
    %v405 = vand.u32 %v285, 65535
    %v406 = vshra.s32 %v285, 16
    %v407 = vcvt.s32.f32 %v405
    %v408 = vcvt.s32.f32 %v406
    %409 = vmin.xlane.f32.xlu0 %v408
    %v410 = vpop.xlane.xlu0 %409
    %vm411 = vcmp.eq.f32.partialorder %v408, %v410
    %v412 = vsel %vm411, %v407, inf
    %413 = vmin.xlane.f32.xlu0 %v412
    %v414 = vpop.xlane.xlu0 %413
    %v415 = vcvt.f32.s32 %v414
    %v416 = vcvt.f32.s32 %v410
    %v417 = vshll.u32 %v416, 16
    %v418 = vadd.s32 %v417, %v415
    %v419 = vand.u32 %v286, 65535
    %v420 = vshra.s32 %v286, 16
    %v421 = vcvt.s32.f32 %v419
    %v422 = vcvt.s32.f32 %v420
    %423 = vmin.xlane.f32.xlu0 %v422
    %v424 = vpop.xlane.xlu0 %423
    %vm425 = vcmp.eq.f32.partialorder %v422, %v424
    %v426 = vsel %vm425, %v421, inf
    %427 = vmin.xlane.f32.xlu0 %v426
    %v428 = vpop.xlane.xlu0 %427
    %v429 = vcvt.f32.s32 %v428
    %v430 = vcvt.f32.s32 %v424
    %v431 = vshll.u32 %v430, 16
    %v432 = vadd.s32 %v431, %v429
    %v433 = vand.u32 %v287, 65535
    %v434 = vshra.s32 %v287, 16
    %v435 = vcvt.s32.f32 %v433
    %v436 = vcvt.s32.f32 %v434
    %437 = vmin.xlane.f32.xlu0 %v436
    %v438 = vpop.xlane.xlu0 %437
    %vm439 = vcmp.eq.f32.partialorder %v436, %v438
    %v440 = vsel %vm439, %v435, inf
    %441 = vmin.xlane.f32.xlu0 %v440
    %v442 = vpop.xlane.xlu0 %441
    %v443 = vcvt.f32.s32 %v442
    %v444 = vcvt.f32.s32 %v438
    %v445 = vshll.u32 %v444, 16
    %v446 = vadd.s32 %v445, %v443
    %v447 = vand.u32 %v288, 65535
    %v448 = vshra.s32 %v288, 16
    %v449 = vcvt.s32.f32 %v447
    %v450 = vcvt.s32.f32 %v448
    %451 = vmin.xlane.f32.xlu0 %v450
    %v452 = vpop.xlane.xlu0 %451
    %vm453 = vcmp.eq.f32.partialorder %v450, %v452
    %v454 = vsel %vm453, %v449, inf
    %455 = vmin.xlane.f32.xlu0 %v454
    %v456 = vpop.xlane.xlu0 %455
    %v457 = vcvt.f32.s32 %v456
    %v458 = vcvt.f32.s32 %v452
    %v459 = vshll.u32 %v458, 16
    %v460 = vadd.s32 %v459, %v457
    %v461 = vand.u32 %v289, 65535
    %v462 = vshra.s32 %v289, 16
    %v463 = vcvt.s32.f32 %v461
    %v464 = vcvt.s32.f32 %v462
    %465 = vmin.xlane.f32.xlu0 %v464
    %v466 = vpop.xlane.xlu0 %465
    %vm467 = vcmp.eq.f32.partialorder %v464, %v466
    %v468 = vsel %vm467, %v463, inf
    %469 = vmin.xlane.f32.xlu0 %v468
    %v470 = vpop.xlane.xlu0 %469
    %v471 = vcvt.f32.s32 %v470
    %v472 = vcvt.f32.s32 %v466
    %v473 = vshll.u32 %v472, 16
    %v474 = vadd.s32 %v473, %v471
    %v475 = vand.u32 %v290, 65535
    %v476 = vshra.s32 %v290, 16
    %v477 = vcvt.s32.f32 %v475
    %v478 = vcvt.s32.f32 %v476
    %479 = vmin.xlane.f32.xlu0 %v478
    %v480 = vpop.xlane.xlu0 %479
    %vm481 = vcmp.eq.f32.partialorder %v478, %v480
    %v482 = vsel %vm481, %v477, inf
    %483 = vmin.xlane.f32.xlu0 %v482
    %v484 = vpop.xlane.xlu0 %483
    %v485 = vcvt.f32.s32 %v484
    %v486 = vcvt.f32.s32 %v480
    %v487 = vshll.u32 %v486, 16
    %v488 = vadd.s32 %v487, %v485
    %v489 = vand.u32 %v291, 65535
    %v490 = vshra.s32 %v291, 16
    %v491 = vcvt.s32.f32 %v489
    %v492 = vcvt.s32.f32 %v490
    %493 = vmin.xlane.f32.xlu0 %v492
    %v494 = vpop.xlane.xlu0 %493
    %vm495 = vcmp.eq.f32.partialorder %v492, %v494
    %v496 = vsel %vm495, %v491, inf
    %497 = vmin.xlane.f32.xlu0 %v496
    %v498 = vpop.xlane.xlu0 %497
    %v499 = vcvt.f32.s32 %v498
    %v500 = vcvt.f32.s32 %v494
    %v501 = vshll.u32 %v500, 16
    %v502 = vadd.s32 %v501, %v499
    %v503 = vand.u32 %v292, 65535
    %v504 = vshra.s32 %v292, 16
    %v505 = vcvt.s32.f32 %v503
    %v506 = vcvt.s32.f32 %v504
    %507 = vmin.xlane.f32.xlu0 %v506
    %v508 = vpop.xlane.xlu0 %507
    %vm509 = vcmp.eq.f32.partialorder %v506, %v508
    %v510 = vsel %vm509, %v505, inf
    %511 = vmin.xlane.f32.xlu0 %v510
    %v512 = vpop.xlane.xlu0 %511
    %v513 = vcvt.f32.s32 %v512
    %v514 = vcvt.f32.s32 %v508
    %v515 = vshll.u32 %v514, 16
    %v516 = vadd.s32 %v515, %v513
    %vm517 = vcmp.eq.s32.totalorder %v228, %v306
    %vm518 = vcmp.eq.s32.totalorder %v228, %v320
    %vm519 = vcmp.eq.s32.totalorder %v228, %v334
    %vm520 = vcmp.eq.s32.totalorder %v228, %v348
    %vm521 = vcmp.eq.s32.totalorder %v228, %v362
    %vm522 = vcmp.eq.s32.totalorder %v228, %v376
    %vm523 = vcmp.eq.s32.totalorder %v228, %v390
    %vm524 = vcmp.eq.s32.totalorder %v228, %v404
    %vm525 = vcmp.eq.s32.totalorder %v228, %v418
    %vm526 = vcmp.eq.s32.totalorder %v228, %v432
    %vm527 = vcmp.eq.s32.totalorder %v228, %v446
    %vm528 = vcmp.eq.s32.totalorder %v228, %v460
    %vm529 = vcmp.eq.s32.totalorder %v228, %v474
    %vm530 = vcmp.eq.s32.totalorder %v228, %v488
    %vm531 = vcmp.eq.s32.totalorder %v228, %v502
    %vm532 = vcmp.eq.s32.totalorder %v228, %v516
    %v533 = vsel %vm517, -1e+30, %v211
    %v534 = vsel %vm518, -1e+30, %v212
    %v535 = vsel %vm519, -1e+30, %v213
    %v536 = vsel %vm520, -1e+30, %v214
    %v537 = vsel %vm521, -1e+30, %v215
    %v538 = vsel %vm522, -1e+30, %v216
    %v539 = vsel %vm523, -1e+30, %v217
    %v540 = vsel %vm524, -1e+30, %v218
    %v541 = vsel %vm525, -1e+30, %v219
    %v542 = vsel %vm526, -1e+30, %v220
    %v543 = vsel %vm527, -1e+30, %v221
    %v544 = vsel %vm528, -1e+30, %v222
    %v545 = vsel %vm529, -1e+30, %v223
    %v546 = vsel %vm530, -1e+30, %v224
    %v547 = vsel %vm531, -1e+30, %v225
    %v548 = vsel %vm532, -1e+30, %v226
    %549 = vmax.xlane.f32.xlu0 %v533
    %v550 = vpop.xlane.xlu0 %549
    %551 = vmax.xlane.f32.xlu0 %v534
    %v552 = vpop.xlane.xlu0 %551
    %553 = vmax.xlane.f32.xlu0 %v535
    %v554 = vpop.xlane.xlu0 %553
    %555 = vmax.xlane.f32.xlu0 %v536
    %v556 = vpop.xlane.xlu0 %555
    %557 = vmax.xlane.f32.xlu0 %v537
    %v558 = vpop.xlane.xlu0 %557
    %559 = vmax.xlane.f32.xlu0 %v538
    %v560 = vpop.xlane.xlu0 %559
    %561 = vmax.xlane.f32.xlu0 %v539
    %v562 = vpop.xlane.xlu0 %561
    %563 = vmax.xlane.f32.xlu0 %v540
    %v564 = vpop.xlane.xlu0 %563
    %565 = vmax.xlane.f32.xlu0 %v541
    %v566 = vpop.xlane.xlu0 %565
    %567 = vmax.xlane.f32.xlu0 %v542
    %v568 = vpop.xlane.xlu0 %567
    %569 = vmax.xlane.f32.xlu0 %v543
    %v570 = vpop.xlane.xlu0 %569
    %571 = vmax.xlane.f32.xlu0 %v544
    %v572 = vpop.xlane.xlu0 %571
    %573 = vmax.xlane.f32.xlu0 %v545
    %v574 = vpop.xlane.xlu0 %573
    %575 = vmax.xlane.f32.xlu0 %v546
    %v576 = vpop.xlane.xlu0 %575
    %577 = vmax.xlane.f32.xlu0 %v547
    %v578 = vpop.xlane.xlu0 %577
    %579 = vmax.xlane.f32.xlu0 %v548
    %v580 = vpop.xlane.xlu0 %579
    %vm581 = vcmp.ge.f32.partialorder %v533, %v550
    %vm582 = vcmp.ge.f32.partialorder %v534, %v552
    %vm583 = vcmp.ge.f32.partialorder %v535, %v554
    %vm584 = vcmp.ge.f32.partialorder %v536, %v556
    %vm585 = vcmp.ge.f32.partialorder %v537, %v558
    %vm586 = vcmp.ge.f32.partialorder %v538, %v560
    %vm587 = vcmp.ge.f32.partialorder %v539, %v562
    %vm588 = vcmp.ge.f32.partialorder %v540, %v564
    %vm589 = vcmp.ge.f32.partialorder %v541, %v566
    %vm590 = vcmp.ge.f32.partialorder %v542, %v568
    %vm591 = vcmp.ge.f32.partialorder %v543, %v570
    %vm592 = vcmp.ge.f32.partialorder %v544, %v572
    %vm593 = vcmp.ge.f32.partialorder %v545, %v574
    %vm594 = vcmp.ge.f32.partialorder %v546, %v576
    %vm595 = vcmp.ge.f32.partialorder %v547, %v578
    %vm596 = vcmp.ge.f32.partialorder %v548, %v580
    %v597 = vsel %vm581, %v228, 128
    %v598 = vsel %vm582, %v228, 128
    %v599 = vsel %vm583, %v228, 128
    %v600 = vsel %vm584, %v228, 128
    %v601 = vsel %vm585, %v228, 128
    %v602 = vsel %vm586, %v228, 128
    %v603 = vsel %vm587, %v228, 128
    %v604 = vsel %vm588, %v228, 128
    %v605 = vsel %vm589, %v228, 128
    %v606 = vsel %vm590, %v228, 128
    %v607 = vsel %vm591, %v228, 128
    %v608 = vsel %vm592, %v228, 128
    %v609 = vsel %vm593, %v228, 128
    %v610 = vsel %vm594, %v228, 128
    %v611 = vsel %vm595, %v228, 128
    %v612 = vsel %vm596, %v228, 128
    %v613 = vand.u32 %v597, 65535
    %v614 = vshra.s32 %v597, 16
    %v615 = vcvt.s32.f32 %v613
    %v616 = vcvt.s32.f32 %v614
    %617 = vmin.xlane.f32.xlu0 %v616
    %v618 = vpop.xlane.xlu0 %617
    %vm619 = vcmp.eq.f32.partialorder %v616, %v618
    %v620 = vsel %vm619, %v615, inf
    %621 = vmin.xlane.f32.xlu0 %v620
    %v622 = vpop.xlane.xlu0 %621
    %v623 = vcvt.f32.s32 %v622
    %v624 = vcvt.f32.s32 %v618
    %v625 = vshll.u32 %v624, 16
    %v626 = vadd.s32 %v625, %v623
    %v627 = vand.u32 %v598, 65535
    %v628 = vshra.s32 %v598, 16
    %v629 = vcvt.s32.f32 %v627
    %v630 = vcvt.s32.f32 %v628
    %631 = vmin.xlane.f32.xlu0 %v630
    %v632 = vpop.xlane.xlu0 %631
    %vm633 = vcmp.eq.f32.partialorder %v630, %v632
    %v634 = vsel %vm633, %v629, inf
    %635 = vmin.xlane.f32.xlu0 %v634
    %v636 = vpop.xlane.xlu0 %635
    %v637 = vcvt.f32.s32 %v636
    %v638 = vcvt.f32.s32 %v632
    %v639 = vshll.u32 %v638, 16
    %v640 = vadd.s32 %v639, %v637
    %v641 = vand.u32 %v599, 65535
    %v642 = vshra.s32 %v599, 16
    %v643 = vcvt.s32.f32 %v641
    %v644 = vcvt.s32.f32 %v642
    %645 = vmin.xlane.f32.xlu0 %v644
    %v646 = vpop.xlane.xlu0 %645
    %vm647 = vcmp.eq.f32.partialorder %v644, %v646
    %v648 = vsel %vm647, %v643, inf
    %649 = vmin.xlane.f32.xlu0 %v648
    %v650 = vpop.xlane.xlu0 %649
    %v651 = vcvt.f32.s32 %v650
    %v652 = vcvt.f32.s32 %v646
    %v653 = vshll.u32 %v652, 16
    %v654 = vadd.s32 %v653, %v651
    %v655 = vand.u32 %v600, 65535
    %v656 = vshra.s32 %v600, 16
    %v657 = vcvt.s32.f32 %v655
    %v658 = vcvt.s32.f32 %v656
    %659 = vmin.xlane.f32.xlu0 %v658
    %v660 = vpop.xlane.xlu0 %659
    %vm661 = vcmp.eq.f32.partialorder %v658, %v660
    %v662 = vsel %vm661, %v657, inf
    %663 = vmin.xlane.f32.xlu0 %v662
    %v664 = vpop.xlane.xlu0 %663
    %v665 = vcvt.f32.s32 %v664
    %v666 = vcvt.f32.s32 %v660
    %v667 = vshll.u32 %v666, 16
    %v668 = vadd.s32 %v667, %v665
    %v669 = vand.u32 %v601, 65535
    %v670 = vshra.s32 %v601, 16
    %v671 = vcvt.s32.f32 %v669
    %v672 = vcvt.s32.f32 %v670
    %673 = vmin.xlane.f32.xlu0 %v672
    %v674 = vpop.xlane.xlu0 %673
    %vm675 = vcmp.eq.f32.partialorder %v672, %v674
    %v676 = vsel %vm675, %v671, inf
    %677 = vmin.xlane.f32.xlu0 %v676
    %v678 = vpop.xlane.xlu0 %677
    %v679 = vcvt.f32.s32 %v678
    %v680 = vcvt.f32.s32 %v674
    %v681 = vshll.u32 %v680, 16
    %v682 = vadd.s32 %v681, %v679
    %v683 = vand.u32 %v602, 65535
    %v684 = vshra.s32 %v602, 16
    %v685 = vcvt.s32.f32 %v683
    %v686 = vcvt.s32.f32 %v684
    %687 = vmin.xlane.f32.xlu0 %v686
    %v688 = vpop.xlane.xlu0 %687
    %vm689 = vcmp.eq.f32.partialorder %v686, %v688
    %v690 = vsel %vm689, %v685, inf
    %691 = vmin.xlane.f32.xlu0 %v690
    %v692 = vpop.xlane.xlu0 %691
    %v693 = vcvt.f32.s32 %v692
    %v694 = vcvt.f32.s32 %v688
    %v695 = vshll.u32 %v694, 16
    %v696 = vadd.s32 %v695, %v693
    %v697 = vand.u32 %v603, 65535
    %v698 = vshra.s32 %v603, 16
    %v699 = vcvt.s32.f32 %v697
    %v700 = vcvt.s32.f32 %v698
    %701 = vmin.xlane.f32.xlu0 %v700
    %v702 = vpop.xlane.xlu0 %701
    %vm703 = vcmp.eq.f32.partialorder %v700, %v702
    %v704 = vsel %vm703, %v699, inf
    %705 = vmin.xlane.f32.xlu0 %v704
    %v706 = vpop.xlane.xlu0 %705
    %v707 = vcvt.f32.s32 %v706
    %v708 = vcvt.f32.s32 %v702
    %v709 = vshll.u32 %v708, 16
    %v710 = vadd.s32 %v709, %v707
    %v711 = vand.u32 %v604, 65535
    %v712 = vshra.s32 %v604, 16
    %v713 = vcvt.s32.f32 %v711
    %v714 = vcvt.s32.f32 %v712
    %715 = vmin.xlane.f32.xlu0 %v714
    %v716 = vpop.xlane.xlu0 %715
    %vm717 = vcmp.eq.f32.partialorder %v714, %v716
    %v718 = vsel %vm717, %v713, inf
    %719 = vmin.xlane.f32.xlu0 %v718
    %v720 = vpop.xlane.xlu0 %719
    %v721 = vcvt.f32.s32 %v720
    %v722 = vcvt.f32.s32 %v716
    %v723 = vshll.u32 %v722, 16
    %v724 = vadd.s32 %v723, %v721
    %v725 = vand.u32 %v605, 65535
    %v726 = vshra.s32 %v605, 16
    %v727 = vcvt.s32.f32 %v725
    %v728 = vcvt.s32.f32 %v726
    %729 = vmin.xlane.f32.xlu0 %v728
    %v730 = vpop.xlane.xlu0 %729
    %vm731 = vcmp.eq.f32.partialorder %v728, %v730
    %v732 = vsel %vm731, %v727, inf
    %733 = vmin.xlane.f32.xlu0 %v732
    %v734 = vpop.xlane.xlu0 %733
    %v735 = vcvt.f32.s32 %v734
    %v736 = vcvt.f32.s32 %v730
    %v737 = vshll.u32 %v736, 16
    %v738 = vadd.s32 %v737, %v735
    %v739 = vand.u32 %v606, 65535
    %v740 = vshra.s32 %v606, 16
    %v741 = vcvt.s32.f32 %v739
    %v742 = vcvt.s32.f32 %v740
    %743 = vmin.xlane.f32.xlu0 %v742
    %v744 = vpop.xlane.xlu0 %743
    %vm745 = vcmp.eq.f32.partialorder %v742, %v744
    %v746 = vsel %vm745, %v741, inf
    %747 = vmin.xlane.f32.xlu0 %v746
    %v748 = vpop.xlane.xlu0 %747
    %v749 = vcvt.f32.s32 %v748
    %v750 = vcvt.f32.s32 %v744
    %v751 = vshll.u32 %v750, 16
    %v752 = vadd.s32 %v751, %v749
    %v753 = vand.u32 %v607, 65535
    %v754 = vshra.s32 %v607, 16
    %v755 = vcvt.s32.f32 %v753
    %v756 = vcvt.s32.f32 %v754
    %757 = vmin.xlane.f32.xlu0 %v756
    %v758 = vpop.xlane.xlu0 %757
    %vm759 = vcmp.eq.f32.partialorder %v756, %v758
    %v760 = vsel %vm759, %v755, inf
    %761 = vmin.xlane.f32.xlu0 %v760
    %v762 = vpop.xlane.xlu0 %761
    %v763 = vcvt.f32.s32 %v762
    %v764 = vcvt.f32.s32 %v758
    %v765 = vshll.u32 %v764, 16
    %v766 = vadd.s32 %v765, %v763
    %v767 = vand.u32 %v608, 65535
    %v768 = vshra.s32 %v608, 16
    %v769 = vcvt.s32.f32 %v767
    %v770 = vcvt.s32.f32 %v768
    %771 = vmin.xlane.f32.xlu0 %v770
    %v772 = vpop.xlane.xlu0 %771
    %vm773 = vcmp.eq.f32.partialorder %v770, %v772
    %v774 = vsel %vm773, %v769, inf
    %775 = vmin.xlane.f32.xlu0 %v774
    %v776 = vpop.xlane.xlu0 %775
    %v777 = vcvt.f32.s32 %v776
    %v778 = vcvt.f32.s32 %v772
    %v779 = vshll.u32 %v778, 16
    %v780 = vadd.s32 %v779, %v777
    %v781 = vand.u32 %v609, 65535
    %v782 = vshra.s32 %v609, 16
    %v783 = vcvt.s32.f32 %v781
    %v784 = vcvt.s32.f32 %v782
    %785 = vmin.xlane.f32.xlu0 %v784
    %v786 = vpop.xlane.xlu0 %785
    %vm787 = vcmp.eq.f32.partialorder %v784, %v786
    %v788 = vsel %vm787, %v783, inf
    %789 = vmin.xlane.f32.xlu0 %v788
    %v790 = vpop.xlane.xlu0 %789
    %v791 = vcvt.f32.s32 %v790
    %v792 = vcvt.f32.s32 %v786
    %v793 = vshll.u32 %v792, 16
    %v794 = vadd.s32 %v793, %v791
    %v795 = vand.u32 %v610, 65535
    %v796 = vshra.s32 %v610, 16
    %v797 = vcvt.s32.f32 %v795
    %v798 = vcvt.s32.f32 %v796
    %799 = vmin.xlane.f32.xlu0 %v798
    %v800 = vpop.xlane.xlu0 %799
    %vm801 = vcmp.eq.f32.partialorder %v798, %v800
    %v802 = vsel %vm801, %v797, inf
    %803 = vmin.xlane.f32.xlu0 %v802
    %v804 = vpop.xlane.xlu0 %803
    %v805 = vcvt.f32.s32 %v804
    %v806 = vcvt.f32.s32 %v800
    %v807 = vshll.u32 %v806, 16
    %v808 = vadd.s32 %v807, %v805
    %v809 = vand.u32 %v611, 65535
    %v810 = vshra.s32 %v611, 16
    %v811 = vcvt.s32.f32 %v809
    %v812 = vcvt.s32.f32 %v810
    %813 = vmin.xlane.f32.xlu0 %v812
    %v814 = vpop.xlane.xlu0 %813
    %vm815 = vcmp.eq.f32.partialorder %v812, %v814
    %v816 = vsel %vm815, %v811, inf
    %817 = vmin.xlane.f32.xlu0 %v816
    %v818 = vpop.xlane.xlu0 %817
    %v819 = vcvt.f32.s32 %v818
    %v820 = vcvt.f32.s32 %v814
    %v821 = vshll.u32 %v820, 16
    %v822 = vadd.s32 %v821, %v819
    %v823 = vand.u32 %v612, 65535
    %v824 = vshra.s32 %v612, 16
    %v825 = vcvt.s32.f32 %v823
    %v826 = vcvt.s32.f32 %v824
    %827 = vmin.xlane.f32.xlu0 %v826
    %v828 = vpop.xlane.xlu0 %827
    %vm829 = vcmp.eq.f32.partialorder %v826, %v828
    %v830 = vsel %vm829, %v825, inf
    %831 = vmin.xlane.f32.xlu0 %v830
    %v832 = vpop.xlane.xlu0 %831
    %v833 = vcvt.f32.s32 %v832
    %v834 = vcvt.f32.s32 %v828
    %v835 = vshll.u32 %v834, 16
    %v836 = vadd.s32 %v835, %v833
    %vm837 = vcmp.eq.s32.totalorder %v228, %v626
    %vm838 = vcmp.eq.s32.totalorder %v228, %v640
    %vm839 = vcmp.eq.s32.totalorder %v228, %v654
    %vm840 = vcmp.eq.s32.totalorder %v228, %v668
    %vm841 = vcmp.eq.s32.totalorder %v228, %v682
    %vm842 = vcmp.eq.s32.totalorder %v228, %v696
    %vm843 = vcmp.eq.s32.totalorder %v228, %v710
    %vm844 = vcmp.eq.s32.totalorder %v228, %v724
    %vm845 = vcmp.eq.s32.totalorder %v228, %v738
    %vm846 = vcmp.eq.s32.totalorder %v228, %v752
    %vm847 = vcmp.eq.s32.totalorder %v228, %v766
    %vm848 = vcmp.eq.s32.totalorder %v228, %v780
    %vm849 = vcmp.eq.s32.totalorder %v228, %v794
    %vm850 = vcmp.eq.s32.totalorder %v228, %v808
    %vm851 = vcmp.eq.s32.totalorder %v228, %v822
    %vm852 = vcmp.eq.s32.totalorder %v228, %v836
    %vm853 = vmor %vm517, %vm837
    %vm854 = vmor %vm518, %vm838
    %vm855 = vmor %vm519, %vm839
    %vm856 = vmor %vm520, %vm840
    %vm857 = vmor %vm521, %vm841
    %vm858 = vmor %vm522, %vm842
    %vm859 = vmor %vm523, %vm843
    %vm860 = vmor %vm524, %vm844
    %vm861 = vmor %vm525, %vm845
    %vm862 = vmor %vm526, %vm846
    %vm863 = vmor %vm527, %vm847
    %vm864 = vmor %vm528, %vm848
    %vm865 = vmor %vm529, %vm849
    %vm866 = vmor %vm530, %vm850
    %vm867 = vmor %vm531, %vm851
    %vm868 = vmor %vm532, %vm852
    %v869 = vsel %vm837, -1e+30, %v533
    %v870 = vsel %vm838, -1e+30, %v534
    %v871 = vsel %vm839, -1e+30, %v535
    %v872 = vsel %vm840, -1e+30, %v536
    %v873 = vsel %vm841, -1e+30, %v537
    %v874 = vsel %vm842, -1e+30, %v538
    %v875 = vsel %vm843, -1e+30, %v539
    %v876 = vsel %vm844, -1e+30, %v540
    %v877 = vsel %vm845, -1e+30, %v541
    %v878 = vsel %vm846, -1e+30, %v542
    %v879 = vsel %vm847, -1e+30, %v543
    %v880 = vsel %vm848, -1e+30, %v544
    %v881 = vsel %vm849, -1e+30, %v545
    %v882 = vsel %vm850, -1e+30, %v546
    %v883 = vsel %vm851, -1e+30, %v547
    %v884 = vsel %vm852, -1e+30, %v548
    %885 = vmax.xlane.f32.xlu0 %v869
    %v886 = vpop.xlane.xlu0 %885
    %887 = vmax.xlane.f32.xlu0 %v870
    %v888 = vpop.xlane.xlu0 %887
    %889 = vmax.xlane.f32.xlu0 %v871
    %v890 = vpop.xlane.xlu0 %889
    %891 = vmax.xlane.f32.xlu0 %v872
    %v892 = vpop.xlane.xlu0 %891
    %893 = vmax.xlane.f32.xlu0 %v873
    %v894 = vpop.xlane.xlu0 %893
    %895 = vmax.xlane.f32.xlu0 %v874
    %v896 = vpop.xlane.xlu0 %895
    %897 = vmax.xlane.f32.xlu0 %v875
    %v898 = vpop.xlane.xlu0 %897
    %899 = vmax.xlane.f32.xlu0 %v876
    %v900 = vpop.xlane.xlu0 %899
    %901 = vmax.xlane.f32.xlu0 %v877
    %v902 = vpop.xlane.xlu0 %901
    %903 = vmax.xlane.f32.xlu0 %v878
    %v904 = vpop.xlane.xlu0 %903
    %905 = vmax.xlane.f32.xlu0 %v879
    %v906 = vpop.xlane.xlu0 %905
    %907 = vmax.xlane.f32.xlu0 %v880
    %v908 = vpop.xlane.xlu0 %907
    %909 = vmax.xlane.f32.xlu0 %v881
    %v910 = vpop.xlane.xlu0 %909
    %911 = vmax.xlane.f32.xlu0 %v882
    %v912 = vpop.xlane.xlu0 %911
    %913 = vmax.xlane.f32.xlu0 %v883
    %v914 = vpop.xlane.xlu0 %913
    %915 = vmax.xlane.f32.xlu0 %v884
    %v916 = vpop.xlane.xlu0 %915
    %vm917 = vcmp.ge.f32.partialorder %v869, %v886
    %vm918 = vcmp.ge.f32.partialorder %v870, %v888
    %vm919 = vcmp.ge.f32.partialorder %v871, %v890
    %vm920 = vcmp.ge.f32.partialorder %v872, %v892
    %vm921 = vcmp.ge.f32.partialorder %v873, %v894
    %vm922 = vcmp.ge.f32.partialorder %v874, %v896
    %vm923 = vcmp.ge.f32.partialorder %v875, %v898
    %vm924 = vcmp.ge.f32.partialorder %v876, %v900
    %vm925 = vcmp.ge.f32.partialorder %v877, %v902
    %vm926 = vcmp.ge.f32.partialorder %v878, %v904
    %vm927 = vcmp.ge.f32.partialorder %v879, %v906
    %vm928 = vcmp.ge.f32.partialorder %v880, %v908
    %vm929 = vcmp.ge.f32.partialorder %v881, %v910
    %vm930 = vcmp.ge.f32.partialorder %v882, %v912
    %vm931 = vcmp.ge.f32.partialorder %v883, %v914
    %vm932 = vcmp.ge.f32.partialorder %v884, %v916
    %v933 = vsel %vm917, %v228, 128
    %v934 = vsel %vm918, %v228, 128
    %v935 = vsel %vm919, %v228, 128
    %v936 = vsel %vm920, %v228, 128
    %v937 = vsel %vm921, %v228, 128
    %v938 = vsel %vm922, %v228, 128
    %v939 = vsel %vm923, %v228, 128
    %v940 = vsel %vm924, %v228, 128
    %v941 = vsel %vm925, %v228, 128
    %v942 = vsel %vm926, %v228, 128
    %v943 = vsel %vm927, %v228, 128
    %v944 = vsel %vm928, %v228, 128
    %v945 = vsel %vm929, %v228, 128
    %v946 = vsel %vm930, %v228, 128
    %v947 = vsel %vm931, %v228, 128
    %v948 = vsel %vm932, %v228, 128
    %v949 = vand.u32 %v933, 65535
    %v950 = vshra.s32 %v933, 16
    %v951 = vcvt.s32.f32 %v949
    %v952 = vcvt.s32.f32 %v950
    %953 = vmin.xlane.f32.xlu0 %v952
    %v954 = vpop.xlane.xlu0 %953
    %vm955 = vcmp.eq.f32.partialorder %v952, %v954
    %v956 = vsel %vm955, %v951, inf
    %957 = vmin.xlane.f32.xlu0 %v956
    %v958 = vpop.xlane.xlu0 %957
    %v959 = vcvt.f32.s32 %v958
    %v960 = vcvt.f32.s32 %v954
    %v961 = vshll.u32 %v960, 16
    %v962 = vadd.s32 %v961, %v959
    %v963 = vand.u32 %v934, 65535
    %v964 = vshra.s32 %v934, 16
    %v965 = vcvt.s32.f32 %v963
    %v966 = vcvt.s32.f32 %v964
    %967 = vmin.xlane.f32.xlu0 %v966
    %v968 = vpop.xlane.xlu0 %967
    %vm969 = vcmp.eq.f32.partialorder %v966, %v968
    %v970 = vsel %vm969, %v965, inf
    %971 = vmin.xlane.f32.xlu0 %v970
    %v972 = vpop.xlane.xlu0 %971
    %v973 = vcvt.f32.s32 %v972
    %v974 = vcvt.f32.s32 %v968
    %v975 = vshll.u32 %v974, 16
    %v976 = vadd.s32 %v975, %v973
    %v977 = vand.u32 %v935, 65535
    %v978 = vshra.s32 %v935, 16
    %v979 = vcvt.s32.f32 %v977
    %v980 = vcvt.s32.f32 %v978
    %981 = vmin.xlane.f32.xlu0 %v980
    %v982 = vpop.xlane.xlu0 %981
    %vm983 = vcmp.eq.f32.partialorder %v980, %v982
    %v984 = vsel %vm983, %v979, inf
    %985 = vmin.xlane.f32.xlu0 %v984
    %v986 = vpop.xlane.xlu0 %985
    %v987 = vcvt.f32.s32 %v986
    %v988 = vcvt.f32.s32 %v982
    %v989 = vshll.u32 %v988, 16
    %v990 = vadd.s32 %v989, %v987
    %v991 = vand.u32 %v936, 65535
    %v992 = vshra.s32 %v936, 16
    %v993 = vcvt.s32.f32 %v991
    %v994 = vcvt.s32.f32 %v992
    %995 = vmin.xlane.f32.xlu0 %v994
    %v996 = vpop.xlane.xlu0 %995
    %vm997 = vcmp.eq.f32.partialorder %v994, %v996
    %v998 = vsel %vm997, %v993, inf
    %999 = vmin.xlane.f32.xlu0 %v998
    %v1000 = vpop.xlane.xlu0 %999
    %v1001 = vcvt.f32.s32 %v1000
    %v1002 = vcvt.f32.s32 %v996
    %v1003 = vshll.u32 %v1002, 16
    %v1004 = vadd.s32 %v1003, %v1001
    %v1005 = vand.u32 %v937, 65535
    %v1006 = vshra.s32 %v937, 16
    %v1007 = vcvt.s32.f32 %v1005
    %v1008 = vcvt.s32.f32 %v1006
    %1009 = vmin.xlane.f32.xlu0 %v1008
    %v1010 = vpop.xlane.xlu0 %1009
    %vm1011 = vcmp.eq.f32.partialorder %v1008, %v1010
    %v1012 = vsel %vm1011, %v1007, inf
    %1013 = vmin.xlane.f32.xlu0 %v1012
    %v1014 = vpop.xlane.xlu0 %1013
    %v1015 = vcvt.f32.s32 %v1014
    %v1016 = vcvt.f32.s32 %v1010
    %v1017 = vshll.u32 %v1016, 16
    %v1018 = vadd.s32 %v1017, %v1015
    %v1019 = vand.u32 %v938, 65535
    %v1020 = vshra.s32 %v938, 16
    %v1021 = vcvt.s32.f32 %v1019
    %v1022 = vcvt.s32.f32 %v1020
    %1023 = vmin.xlane.f32.xlu0 %v1022
    %v1024 = vpop.xlane.xlu0 %1023
    %vm1025 = vcmp.eq.f32.partialorder %v1022, %v1024
    %v1026 = vsel %vm1025, %v1021, inf
    %1027 = vmin.xlane.f32.xlu0 %v1026
    %v1028 = vpop.xlane.xlu0 %1027
    %v1029 = vcvt.f32.s32 %v1028
    %v1030 = vcvt.f32.s32 %v1024
    %v1031 = vshll.u32 %v1030, 16
    %v1032 = vadd.s32 %v1031, %v1029
    %v1033 = vand.u32 %v939, 65535
    %v1034 = vshra.s32 %v939, 16
    %v1035 = vcvt.s32.f32 %v1033
    %v1036 = vcvt.s32.f32 %v1034
    %1037 = vmin.xlane.f32.xlu0 %v1036
    %v1038 = vpop.xlane.xlu0 %1037
    %vm1039 = vcmp.eq.f32.partialorder %v1036, %v1038
    %v1040 = vsel %vm1039, %v1035, inf
    %1041 = vmin.xlane.f32.xlu0 %v1040
    %v1042 = vpop.xlane.xlu0 %1041
    %v1043 = vcvt.f32.s32 %v1042
    %v1044 = vcvt.f32.s32 %v1038
    %v1045 = vshll.u32 %v1044, 16
    %v1046 = vadd.s32 %v1045, %v1043
    %v1047 = vand.u32 %v940, 65535
    %v1048 = vshra.s32 %v940, 16
    %v1049 = vcvt.s32.f32 %v1047
    %v1050 = vcvt.s32.f32 %v1048
    %1051 = vmin.xlane.f32.xlu0 %v1050
    %v1052 = vpop.xlane.xlu0 %1051
    %vm1053 = vcmp.eq.f32.partialorder %v1050, %v1052
    %v1054 = vsel %vm1053, %v1049, inf
    %1055 = vmin.xlane.f32.xlu0 %v1054
    %v1056 = vpop.xlane.xlu0 %1055
    %v1057 = vcvt.f32.s32 %v1056
    %v1058 = vcvt.f32.s32 %v1052
    %v1059 = vshll.u32 %v1058, 16
    %v1060 = vadd.s32 %v1059, %v1057
    %v1061 = vand.u32 %v941, 65535
    %v1062 = vshra.s32 %v941, 16
    %v1063 = vcvt.s32.f32 %v1061
    %v1064 = vcvt.s32.f32 %v1062
    %1065 = vmin.xlane.f32.xlu0 %v1064
    %v1066 = vpop.xlane.xlu0 %1065
    %vm1067 = vcmp.eq.f32.partialorder %v1064, %v1066
    %v1068 = vsel %vm1067, %v1063, inf
    %1069 = vmin.xlane.f32.xlu0 %v1068
    %v1070 = vpop.xlane.xlu0 %1069
    %v1071 = vcvt.f32.s32 %v1070
    %v1072 = vcvt.f32.s32 %v1066
    %v1073 = vshll.u32 %v1072, 16
    %v1074 = vadd.s32 %v1073, %v1071
    %v1075 = vand.u32 %v942, 65535
    %v1076 = vshra.s32 %v942, 16
    %v1077 = vcvt.s32.f32 %v1075
    %v1078 = vcvt.s32.f32 %v1076
    %1079 = vmin.xlane.f32.xlu0 %v1078
    %v1080 = vpop.xlane.xlu0 %1079
    %vm1081 = vcmp.eq.f32.partialorder %v1078, %v1080
    %v1082 = vsel %vm1081, %v1077, inf
    %1083 = vmin.xlane.f32.xlu0 %v1082
    %v1084 = vpop.xlane.xlu0 %1083
    %v1085 = vcvt.f32.s32 %v1084
    %v1086 = vcvt.f32.s32 %v1080
    %v1087 = vshll.u32 %v1086, 16
    %v1088 = vadd.s32 %v1087, %v1085
    %v1089 = vand.u32 %v943, 65535
    %v1090 = vshra.s32 %v943, 16
    %v1091 = vcvt.s32.f32 %v1089
    %v1092 = vcvt.s32.f32 %v1090
    %1093 = vmin.xlane.f32.xlu0 %v1092
    %v1094 = vpop.xlane.xlu0 %1093
    %vm1095 = vcmp.eq.f32.partialorder %v1092, %v1094
    %v1096 = vsel %vm1095, %v1091, inf
    %1097 = vmin.xlane.f32.xlu0 %v1096
    %v1098 = vpop.xlane.xlu0 %1097
    %v1099 = vcvt.f32.s32 %v1098
    %v1100 = vcvt.f32.s32 %v1094
    %v1101 = vshll.u32 %v1100, 16
    %v1102 = vadd.s32 %v1101, %v1099
    %v1103 = vand.u32 %v944, 65535
    %v1104 = vshra.s32 %v944, 16
    %v1105 = vcvt.s32.f32 %v1103
    %v1106 = vcvt.s32.f32 %v1104
    %1107 = vmin.xlane.f32.xlu0 %v1106
    %v1108 = vpop.xlane.xlu0 %1107
    %vm1109 = vcmp.eq.f32.partialorder %v1106, %v1108
    %v1110 = vsel %vm1109, %v1105, inf
    %1111 = vmin.xlane.f32.xlu0 %v1110
    %v1112 = vpop.xlane.xlu0 %1111
    %v1113 = vcvt.f32.s32 %v1112
    %v1114 = vcvt.f32.s32 %v1108
    %v1115 = vshll.u32 %v1114, 16
    %v1116 = vadd.s32 %v1115, %v1113
    %v1117 = vand.u32 %v945, 65535
    %v1118 = vshra.s32 %v945, 16
    %v1119 = vcvt.s32.f32 %v1117
    %v1120 = vcvt.s32.f32 %v1118
    %1121 = vmin.xlane.f32.xlu0 %v1120
    %v1122 = vpop.xlane.xlu0 %1121
    %vm1123 = vcmp.eq.f32.partialorder %v1120, %v1122
    %v1124 = vsel %vm1123, %v1119, inf
    %1125 = vmin.xlane.f32.xlu0 %v1124
    %v1126 = vpop.xlane.xlu0 %1125
    %v1127 = vcvt.f32.s32 %v1126
    %v1128 = vcvt.f32.s32 %v1122
    %v1129 = vshll.u32 %v1128, 16
    %v1130 = vadd.s32 %v1129, %v1127
    %v1131 = vand.u32 %v946, 65535
    %v1132 = vshra.s32 %v946, 16
    %v1133 = vcvt.s32.f32 %v1131
    %v1134 = vcvt.s32.f32 %v1132
    %1135 = vmin.xlane.f32.xlu0 %v1134
    %v1136 = vpop.xlane.xlu0 %1135
    %vm1137 = vcmp.eq.f32.partialorder %v1134, %v1136
    %v1138 = vsel %vm1137, %v1133, inf
    %1139 = vmin.xlane.f32.xlu0 %v1138
    %v1140 = vpop.xlane.xlu0 %1139
    %v1141 = vcvt.f32.s32 %v1140
    %v1142 = vcvt.f32.s32 %v1136
    %v1143 = vshll.u32 %v1142, 16
    %v1144 = vadd.s32 %v1143, %v1141
    %v1145 = vand.u32 %v947, 65535
    %v1146 = vshra.s32 %v947, 16
    %v1147 = vcvt.s32.f32 %v1145
    %v1148 = vcvt.s32.f32 %v1146
    %1149 = vmin.xlane.f32.xlu0 %v1148
    %v1150 = vpop.xlane.xlu0 %1149
    %vm1151 = vcmp.eq.f32.partialorder %v1148, %v1150
    %v1152 = vsel %vm1151, %v1147, inf
    %1153 = vmin.xlane.f32.xlu0 %v1152
    %v1154 = vpop.xlane.xlu0 %1153
    %v1155 = vcvt.f32.s32 %v1154
    %v1156 = vcvt.f32.s32 %v1150
    %v1157 = vshll.u32 %v1156, 16
    %v1158 = vadd.s32 %v1157, %v1155
    %v1159 = vand.u32 %v948, 65535
    %v1160 = vshra.s32 %v948, 16
    %v1161 = vcvt.s32.f32 %v1159
    %v1162 = vcvt.s32.f32 %v1160
    %1163 = vmin.xlane.f32.xlu0 %v1162
    %v1164 = vpop.xlane.xlu0 %1163
    %vm1165 = vcmp.eq.f32.partialorder %v1162, %v1164
    %v1166 = vsel %vm1165, %v1161, inf
    %1167 = vmin.xlane.f32.xlu0 %v1166
    %v1168 = vpop.xlane.xlu0 %1167
    %v1169 = vcvt.f32.s32 %v1168
    %v1170 = vcvt.f32.s32 %v1164
    %v1171 = vshll.u32 %v1170, 16
    %v1172 = vadd.s32 %v1171, %v1169
    %vm1173 = vcmp.eq.s32.totalorder %v228, %v962
    %vm1174 = vcmp.eq.s32.totalorder %v228, %v976
    %vm1175 = vcmp.eq.s32.totalorder %v228, %v990
    %vm1176 = vcmp.eq.s32.totalorder %v228, %v1004
    %vm1177 = vcmp.eq.s32.totalorder %v228, %v1018
    %vm1178 = vcmp.eq.s32.totalorder %v228, %v1032
    %vm1179 = vcmp.eq.s32.totalorder %v228, %v1046
    %vm1180 = vcmp.eq.s32.totalorder %v228, %v1060
    %vm1181 = vcmp.eq.s32.totalorder %v228, %v1074
    %vm1182 = vcmp.eq.s32.totalorder %v228, %v1088
    %vm1183 = vcmp.eq.s32.totalorder %v228, %v1102
    %vm1184 = vcmp.eq.s32.totalorder %v228, %v1116
    %vm1185 = vcmp.eq.s32.totalorder %v228, %v1130
    %vm1186 = vcmp.eq.s32.totalorder %v228, %v1144
    %vm1187 = vcmp.eq.s32.totalorder %v228, %v1158
    %vm1188 = vcmp.eq.s32.totalorder %v228, %v1172
    %vm1189 = vmor %vm853, %vm1173
    %vm1190 = vmor %vm854, %vm1174
    %vm1191 = vmor %vm855, %vm1175
    %vm1192 = vmor %vm856, %vm1176
    %vm1193 = vmor %vm857, %vm1177
    %vm1194 = vmor %vm858, %vm1178
    %vm1195 = vmor %vm859, %vm1179
    %vm1196 = vmor %vm860, %vm1180
    %vm1197 = vmor %vm861, %vm1181
    %vm1198 = vmor %vm862, %vm1182
    %vm1199 = vmor %vm863, %vm1183
    %vm1200 = vmor %vm864, %vm1184
    %vm1201 = vmor %vm865, %vm1185
    %vm1202 = vmor %vm866, %vm1186
    %vm1203 = vmor %vm867, %vm1187
    %vm1204 = vmor %vm868, %vm1188
    %v1205 = vsel %vm1173, -1e+30, %v869
    %v1206 = vsel %vm1174, -1e+30, %v870
    %v1207 = vsel %vm1175, -1e+30, %v871
    %v1208 = vsel %vm1176, -1e+30, %v872
    %v1209 = vsel %vm1177, -1e+30, %v873
    %v1210 = vsel %vm1178, -1e+30, %v874
    %v1211 = vsel %vm1179, -1e+30, %v875
    %v1212 = vsel %vm1180, -1e+30, %v876
    %v1213 = vsel %vm1181, -1e+30, %v877
    %v1214 = vsel %vm1182, -1e+30, %v878
    %v1215 = vsel %vm1183, -1e+30, %v879
    %v1216 = vsel %vm1184, -1e+30, %v880
    %v1217 = vsel %vm1185, -1e+30, %v881
    %v1218 = vsel %vm1186, -1e+30, %v882
    %v1219 = vsel %vm1187, -1e+30, %v883
    %v1220 = vsel %vm1188, -1e+30, %v884
    %1221 = vmax.xlane.f32.xlu0 %v1205
    %v1222 = vpop.xlane.xlu0 %1221
    %1223 = vmax.xlane.f32.xlu0 %v1206
    %v1224 = vpop.xlane.xlu0 %1223
    %1225 = vmax.xlane.f32.xlu0 %v1207
    %v1226 = vpop.xlane.xlu0 %1225
    %1227 = vmax.xlane.f32.xlu0 %v1208
    %v1228 = vpop.xlane.xlu0 %1227
    %1229 = vmax.xlane.f32.xlu0 %v1209
    %v1230 = vpop.xlane.xlu0 %1229
    %1231 = vmax.xlane.f32.xlu0 %v1210
    %v1232 = vpop.xlane.xlu0 %1231
    %1233 = vmax.xlane.f32.xlu0 %v1211
    %v1234 = vpop.xlane.xlu0 %1233
    %1235 = vmax.xlane.f32.xlu0 %v1212
    %v1236 = vpop.xlane.xlu0 %1235
    %1237 = vmax.xlane.f32.xlu0 %v1213
    %v1238 = vpop.xlane.xlu0 %1237
    %1239 = vmax.xlane.f32.xlu0 %v1214
    %v1240 = vpop.xlane.xlu0 %1239
    %1241 = vmax.xlane.f32.xlu0 %v1215
    %v1242 = vpop.xlane.xlu0 %1241
    %1243 = vmax.xlane.f32.xlu0 %v1216
    %v1244 = vpop.xlane.xlu0 %1243
    %1245 = vmax.xlane.f32.xlu0 %v1217
    %v1246 = vpop.xlane.xlu0 %1245
    %1247 = vmax.xlane.f32.xlu0 %v1218
    %v1248 = vpop.xlane.xlu0 %1247
    %1249 = vmax.xlane.f32.xlu0 %v1219
    %v1250 = vpop.xlane.xlu0 %1249
    %1251 = vmax.xlane.f32.xlu0 %v1220
    %v1252 = vpop.xlane.xlu0 %1251
    %vm1253 = vcmp.ge.f32.partialorder %v1205, %v1222
    %vm1254 = vcmp.ge.f32.partialorder %v1206, %v1224
    %vm1255 = vcmp.ge.f32.partialorder %v1207, %v1226
    %vm1256 = vcmp.ge.f32.partialorder %v1208, %v1228
    %vm1257 = vcmp.ge.f32.partialorder %v1209, %v1230
    %vm1258 = vcmp.ge.f32.partialorder %v1210, %v1232
    %vm1259 = vcmp.ge.f32.partialorder %v1211, %v1234
    %vm1260 = vcmp.ge.f32.partialorder %v1212, %v1236
    %vm1261 = vcmp.ge.f32.partialorder %v1213, %v1238
    %vm1262 = vcmp.ge.f32.partialorder %v1214, %v1240
    %vm1263 = vcmp.ge.f32.partialorder %v1215, %v1242
    %vm1264 = vcmp.ge.f32.partialorder %v1216, %v1244
    %vm1265 = vcmp.ge.f32.partialorder %v1217, %v1246
    %vm1266 = vcmp.ge.f32.partialorder %v1218, %v1248
    %vm1267 = vcmp.ge.f32.partialorder %v1219, %v1250
    %vm1268 = vcmp.ge.f32.partialorder %v1220, %v1252
    %v1269 = vsel %vm1253, %v228, 128
    %v1270 = vsel %vm1254, %v228, 128
    %v1271 = vsel %vm1255, %v228, 128
    %v1272 = vsel %vm1256, %v228, 128
    %v1273 = vsel %vm1257, %v228, 128
    %v1274 = vsel %vm1258, %v228, 128
    %v1275 = vsel %vm1259, %v228, 128
    %v1276 = vsel %vm1260, %v228, 128
    %v1277 = vsel %vm1261, %v228, 128
    %v1278 = vsel %vm1262, %v228, 128
    %v1279 = vsel %vm1263, %v228, 128
    %v1280 = vsel %vm1264, %v228, 128
    %v1281 = vsel %vm1265, %v228, 128
    %v1282 = vsel %vm1266, %v228, 128
    %v1283 = vsel %vm1267, %v228, 128
    %v1284 = vsel %vm1268, %v228, 128
    %v1285 = vand.u32 %v1269, 65535
    %v1286 = vshra.s32 %v1269, 16
    %v1287 = vcvt.s32.f32 %v1285
    %v1288 = vcvt.s32.f32 %v1286
    %1289 = vmin.xlane.f32.xlu0 %v1288
    %v1290 = vpop.xlane.xlu0 %1289
    %vm1291 = vcmp.eq.f32.partialorder %v1288, %v1290
    %v1292 = vsel %vm1291, %v1287, inf
    %1293 = vmin.xlane.f32.xlu0 %v1292
    %v1294 = vpop.xlane.xlu0 %1293
    %v1295 = vcvt.f32.s32 %v1294
    %v1296 = vcvt.f32.s32 %v1290
    %v1297 = vshll.u32 %v1296, 16
    %v1298 = vadd.s32 %v1297, %v1295
    %v1299 = vand.u32 %v1270, 65535
    %v1300 = vshra.s32 %v1270, 16
    %v1301 = vcvt.s32.f32 %v1299
    %v1302 = vcvt.s32.f32 %v1300
    %1303 = vmin.xlane.f32.xlu0 %v1302
    %v1304 = vpop.xlane.xlu0 %1303
    %vm1305 = vcmp.eq.f32.partialorder %v1302, %v1304
    %v1306 = vsel %vm1305, %v1301, inf
    %1307 = vmin.xlane.f32.xlu0 %v1306
    %v1308 = vpop.xlane.xlu0 %1307
    %v1309 = vcvt.f32.s32 %v1308
    %v1310 = vcvt.f32.s32 %v1304
    %v1311 = vshll.u32 %v1310, 16
    %v1312 = vadd.s32 %v1311, %v1309
    %v1313 = vand.u32 %v1271, 65535
    %v1314 = vshra.s32 %v1271, 16
    %v1315 = vcvt.s32.f32 %v1313
    %v1316 = vcvt.s32.f32 %v1314
    %1317 = vmin.xlane.f32.xlu0 %v1316
    %v1318 = vpop.xlane.xlu0 %1317
    %vm1319 = vcmp.eq.f32.partialorder %v1316, %v1318
    %v1320 = vsel %vm1319, %v1315, inf
    %1321 = vmin.xlane.f32.xlu0 %v1320
    %v1322 = vpop.xlane.xlu0 %1321
    %v1323 = vcvt.f32.s32 %v1322
    %v1324 = vcvt.f32.s32 %v1318
    %v1325 = vshll.u32 %v1324, 16
    %v1326 = vadd.s32 %v1325, %v1323
    %v1327 = vand.u32 %v1272, 65535
    %v1328 = vshra.s32 %v1272, 16
    %v1329 = vcvt.s32.f32 %v1327
    %v1330 = vcvt.s32.f32 %v1328
    %1331 = vmin.xlane.f32.xlu0 %v1330
    %v1332 = vpop.xlane.xlu0 %1331
    %vm1333 = vcmp.eq.f32.partialorder %v1330, %v1332
    %v1334 = vsel %vm1333, %v1329, inf
    %1335 = vmin.xlane.f32.xlu0 %v1334
    %v1336 = vpop.xlane.xlu0 %1335
    %v1337 = vcvt.f32.s32 %v1336
    %v1338 = vcvt.f32.s32 %v1332
    %v1339 = vshll.u32 %v1338, 16
    %v1340 = vadd.s32 %v1339, %v1337
    %v1341 = vand.u32 %v1273, 65535
    %v1342 = vshra.s32 %v1273, 16
    %v1343 = vcvt.s32.f32 %v1341
    %v1344 = vcvt.s32.f32 %v1342
    %1345 = vmin.xlane.f32.xlu0 %v1344
    %v1346 = vpop.xlane.xlu0 %1345
    %vm1347 = vcmp.eq.f32.partialorder %v1344, %v1346
    %v1348 = vsel %vm1347, %v1343, inf
    %1349 = vmin.xlane.f32.xlu0 %v1348
    %v1350 = vpop.xlane.xlu0 %1349
    %v1351 = vcvt.f32.s32 %v1350
    %v1352 = vcvt.f32.s32 %v1346
    %v1353 = vshll.u32 %v1352, 16
    %v1354 = vadd.s32 %v1353, %v1351
    %v1355 = vand.u32 %v1274, 65535
    %v1356 = vshra.s32 %v1274, 16
    %v1357 = vcvt.s32.f32 %v1355
    %v1358 = vcvt.s32.f32 %v1356
    %1359 = vmin.xlane.f32.xlu0 %v1358
    %v1360 = vpop.xlane.xlu0 %1359
    %vm1361 = vcmp.eq.f32.partialorder %v1358, %v1360
    %v1362 = vsel %vm1361, %v1357, inf
    %1363 = vmin.xlane.f32.xlu0 %v1362
    %v1364 = vpop.xlane.xlu0 %1363
    %v1365 = vcvt.f32.s32 %v1364
    %v1366 = vcvt.f32.s32 %v1360
    %v1367 = vshll.u32 %v1366, 16
    %v1368 = vadd.s32 %v1367, %v1365
    %v1369 = vand.u32 %v1275, 65535
    %v1370 = vshra.s32 %v1275, 16
    %v1371 = vcvt.s32.f32 %v1369
    %v1372 = vcvt.s32.f32 %v1370
    %1373 = vmin.xlane.f32.xlu0 %v1372
    %v1374 = vpop.xlane.xlu0 %1373
    %vm1375 = vcmp.eq.f32.partialorder %v1372, %v1374
    %v1376 = vsel %vm1375, %v1371, inf
    %1377 = vmin.xlane.f32.xlu0 %v1376
    %v1378 = vpop.xlane.xlu0 %1377
    %v1379 = vcvt.f32.s32 %v1378
    %v1380 = vcvt.f32.s32 %v1374
    %v1381 = vshll.u32 %v1380, 16
    %v1382 = vadd.s32 %v1381, %v1379
    %v1383 = vand.u32 %v1276, 65535
    %v1384 = vshra.s32 %v1276, 16
    %v1385 = vcvt.s32.f32 %v1383
    %v1386 = vcvt.s32.f32 %v1384
    %1387 = vmin.xlane.f32.xlu0 %v1386
    %v1388 = vpop.xlane.xlu0 %1387
    %vm1389 = vcmp.eq.f32.partialorder %v1386, %v1388
    %v1390 = vsel %vm1389, %v1385, inf
    %1391 = vmin.xlane.f32.xlu0 %v1390
    %v1392 = vpop.xlane.xlu0 %1391
    %v1393 = vcvt.f32.s32 %v1392
    %v1394 = vcvt.f32.s32 %v1388
    %v1395 = vshll.u32 %v1394, 16
    %v1396 = vadd.s32 %v1395, %v1393
    %v1397 = vand.u32 %v1277, 65535
    %v1398 = vshra.s32 %v1277, 16
    %v1399 = vcvt.s32.f32 %v1397
    %v1400 = vcvt.s32.f32 %v1398
    %1401 = vmin.xlane.f32.xlu0 %v1400
    %v1402 = vpop.xlane.xlu0 %1401
    %vm1403 = vcmp.eq.f32.partialorder %v1400, %v1402
    %v1404 = vsel %vm1403, %v1399, inf
    %1405 = vmin.xlane.f32.xlu0 %v1404
    %v1406 = vpop.xlane.xlu0 %1405
    %v1407 = vcvt.f32.s32 %v1406
    %v1408 = vcvt.f32.s32 %v1402
    %v1409 = vshll.u32 %v1408, 16
    %v1410 = vadd.s32 %v1409, %v1407
    %v1411 = vand.u32 %v1278, 65535
    %v1412 = vshra.s32 %v1278, 16
    %v1413 = vcvt.s32.f32 %v1411
    %v1414 = vcvt.s32.f32 %v1412
    %1415 = vmin.xlane.f32.xlu0 %v1414
    %v1416 = vpop.xlane.xlu0 %1415
    %vm1417 = vcmp.eq.f32.partialorder %v1414, %v1416
    %v1418 = vsel %vm1417, %v1413, inf
    %1419 = vmin.xlane.f32.xlu0 %v1418
    %v1420 = vpop.xlane.xlu0 %1419
    %v1421 = vcvt.f32.s32 %v1420
    %v1422 = vcvt.f32.s32 %v1416
    %v1423 = vshll.u32 %v1422, 16
    %v1424 = vadd.s32 %v1423, %v1421
    %v1425 = vand.u32 %v1279, 65535
    %v1426 = vshra.s32 %v1279, 16
    %v1427 = vcvt.s32.f32 %v1425
    %v1428 = vcvt.s32.f32 %v1426
    %1429 = vmin.xlane.f32.xlu0 %v1428
    %v1430 = vpop.xlane.xlu0 %1429
    %vm1431 = vcmp.eq.f32.partialorder %v1428, %v1430
    %v1432 = vsel %vm1431, %v1427, inf
    %1433 = vmin.xlane.f32.xlu0 %v1432
    %v1434 = vpop.xlane.xlu0 %1433
    %v1435 = vcvt.f32.s32 %v1434
    %v1436 = vcvt.f32.s32 %v1430
    %v1437 = vshll.u32 %v1436, 16
    %v1438 = vadd.s32 %v1437, %v1435
    %v1439 = vand.u32 %v1280, 65535
    %v1440 = vshra.s32 %v1280, 16
    %v1441 = vcvt.s32.f32 %v1439
    %v1442 = vcvt.s32.f32 %v1440
    %1443 = vmin.xlane.f32.xlu0 %v1442
    %v1444 = vpop.xlane.xlu0 %1443
    %vm1445 = vcmp.eq.f32.partialorder %v1442, %v1444
    %v1446 = vsel %vm1445, %v1441, inf
    %1447 = vmin.xlane.f32.xlu0 %v1446
    %v1448 = vpop.xlane.xlu0 %1447
    %v1449 = vcvt.f32.s32 %v1448
    %v1450 = vcvt.f32.s32 %v1444
    %v1451 = vshll.u32 %v1450, 16
    %v1452 = vadd.s32 %v1451, %v1449
    %v1453 = vand.u32 %v1281, 65535
    %v1454 = vshra.s32 %v1281, 16
    %v1455 = vcvt.s32.f32 %v1453
    %v1456 = vcvt.s32.f32 %v1454
    %1457 = vmin.xlane.f32.xlu0 %v1456
    %v1458 = vpop.xlane.xlu0 %1457
    %vm1459 = vcmp.eq.f32.partialorder %v1456, %v1458
    %v1460 = vsel %vm1459, %v1455, inf
    %1461 = vmin.xlane.f32.xlu0 %v1460
    %v1462 = vpop.xlane.xlu0 %1461
    %v1463 = vcvt.f32.s32 %v1462
    %v1464 = vcvt.f32.s32 %v1458
    %v1465 = vshll.u32 %v1464, 16
    %v1466 = vadd.s32 %v1465, %v1463
    %v1467 = vand.u32 %v1282, 65535
    %v1468 = vshra.s32 %v1282, 16
    %v1469 = vcvt.s32.f32 %v1467
    %v1470 = vcvt.s32.f32 %v1468
    %1471 = vmin.xlane.f32.xlu0 %v1470
    %v1472 = vpop.xlane.xlu0 %1471
    %vm1473 = vcmp.eq.f32.partialorder %v1470, %v1472
    %v1474 = vsel %vm1473, %v1469, inf
    %1475 = vmin.xlane.f32.xlu0 %v1474
    %v1476 = vpop.xlane.xlu0 %1475
    %v1477 = vcvt.f32.s32 %v1476
    %v1478 = vcvt.f32.s32 %v1472
    %v1479 = vshll.u32 %v1478, 16
    %v1480 = vadd.s32 %v1479, %v1477
    %v1481 = vand.u32 %v1283, 65535
    %v1482 = vshra.s32 %v1283, 16
    %v1483 = vcvt.s32.f32 %v1481
    %v1484 = vcvt.s32.f32 %v1482
    %1485 = vmin.xlane.f32.xlu0 %v1484
    %v1486 = vpop.xlane.xlu0 %1485
    %vm1487 = vcmp.eq.f32.partialorder %v1484, %v1486
    %v1488 = vsel %vm1487, %v1483, inf
    %1489 = vmin.xlane.f32.xlu0 %v1488
    %v1490 = vpop.xlane.xlu0 %1489
    %v1491 = vcvt.f32.s32 %v1490
    %v1492 = vcvt.f32.s32 %v1486
    %v1493 = vshll.u32 %v1492, 16
    %v1494 = vadd.s32 %v1493, %v1491
    %v1495 = vand.u32 %v1284, 65535
    %v1496 = vshra.s32 %v1284, 16
    %v1497 = vcvt.s32.f32 %v1495
    %v1498 = vcvt.s32.f32 %v1496
    %1499 = vmin.xlane.f32.xlu0 %v1498
    %v1500 = vpop.xlane.xlu0 %1499
    %vm1501 = vcmp.eq.f32.partialorder %v1498, %v1500
    %v1502 = vsel %vm1501, %v1497, inf
    %1503 = vmin.xlane.f32.xlu0 %v1502
    %v1504 = vpop.xlane.xlu0 %1503
    %v1505 = vcvt.f32.s32 %v1504
    %v1506 = vcvt.f32.s32 %v1500
    %v1507 = vshll.u32 %v1506, 16
    %v1508 = vadd.s32 %v1507, %v1505
    %vm1509 = vcmp.eq.s32.totalorder %v228, %v1298
    %vm1510 = vcmp.eq.s32.totalorder %v228, %v1312
    %vm1511 = vcmp.eq.s32.totalorder %v228, %v1326
    %vm1512 = vcmp.eq.s32.totalorder %v228, %v1340
    %vm1513 = vcmp.eq.s32.totalorder %v228, %v1354
    %vm1514 = vcmp.eq.s32.totalorder %v228, %v1368
    %vm1515 = vcmp.eq.s32.totalorder %v228, %v1382
    %vm1516 = vcmp.eq.s32.totalorder %v228, %v1396
    %vm1517 = vcmp.eq.s32.totalorder %v228, %v1410
    %vm1518 = vcmp.eq.s32.totalorder %v228, %v1424
    %vm1519 = vcmp.eq.s32.totalorder %v228, %v1438
    %vm1520 = vcmp.eq.s32.totalorder %v228, %v1452
    %vm1521 = vcmp.eq.s32.totalorder %v228, %v1466
    %vm1522 = vcmp.eq.s32.totalorder %v228, %v1480
    %vm1523 = vcmp.eq.s32.totalorder %v228, %v1494
    %vm1524 = vcmp.eq.s32.totalorder %v228, %v1508
    %vm1525 = vmor %vm1189, %vm1509
    %vm1526 = vmor %vm1190, %vm1510
    %vm1527 = vmor %vm1191, %vm1511
    %vm1528 = vmor %vm1192, %vm1512
    %vm1529 = vmor %vm1193, %vm1513
    %vm1530 = vmor %vm1194, %vm1514
    %vm1531 = vmor %vm1195, %vm1515
    %vm1532 = vmor %vm1196, %vm1516
    %vm1533 = vmor %vm1197, %vm1517
    %vm1534 = vmor %vm1198, %vm1518
    %vm1535 = vmor %vm1199, %vm1519
    %vm1536 = vmor %vm1200, %vm1520
    %vm1537 = vmor %vm1201, %vm1521
    %vm1538 = vmor %vm1202, %vm1522
    %vm1539 = vmor %vm1203, %vm1523
    %vm1540 = vmor %vm1204, %vm1524
    %v1541 = vld [vmem:[#allocation6] sm:$0xff]
    %v1542 = vld [vmem:[#allocation6 + $0x8] sm:$0xff]
    %v1543 = vld [vmem:[#allocation6 + $0x10] sm:$0xff]
    %v1544 = vld [vmem:[#allocation6 + $0x18] sm:$0xff]
    %v1545 = vld [vmem:[#allocation6 + $0x20] sm:$0xff]
    %v1546 = vld [vmem:[#allocation6 + $0x28] sm:$0xff]
    %v1547 = vld [vmem:[#allocation6 + $0x30] sm:$0xff]
    %v1548 = vld [vmem:[#allocation6 + $0x38] sm:$0xff]
    %v1549 = vld [vmem:[#allocation6 + $0x40] sm:$0xff]
    %v1550 = vld [vmem:[#allocation6 + $0x48] sm:$0xff]
    %v1551 = vld [vmem:[#allocation6 + $0x50] sm:$0xff]
    %v1552 = vld [vmem:[#allocation6 + $0x58] sm:$0xff]
    %v1553 = vld [vmem:[#allocation6 + $0x60] sm:$0xff]
    %v1554 = vld [vmem:[#allocation6 + $0x68] sm:$0xff]
    %v1555 = vld [vmem:[#allocation6 + $0x70] sm:$0xff]
    %v1556 = vld [vmem:[#allocation6 + $0x78] sm:$0xff]
    %v1557 = vsub.f32 1.0, %v1541
    %v1558 = vsub.f32 1.0, %v1542
    %v1559 = vsub.f32 1.0, %v1543
    %v1560 = vsub.f32 1.0, %v1544
    %v1561 = vsub.f32 1.0, %v1545
    %v1562 = vsub.f32 1.0, %v1546
    %v1563 = vsub.f32 1.0, %v1547
    %v1564 = vsub.f32 1.0, %v1548
    %v1565 = vsub.f32 1.0, %v1549
    %v1566 = vsub.f32 1.0, %v1550
    %v1567 = vsub.f32 1.0, %v1551
    %v1568 = vsub.f32 1.0, %v1552
    %v1569 = vsub.f32 1.0, %v1553
    %v1570 = vsub.f32 1.0, %v1554
    %v1571 = vsub.f32 1.0, %v1555
    %v1572 = vsub.f32 1.0, %v1556
    %v1573 = vsel %vm1525, %v1557, %v1541
    %v1574 = vsel %vm1526, %v1558, %v1542
    %v1575 = vsel %vm1527, %v1559, %v1543
    %v1576 = vsel %vm1528, %v1560, %v1544
    %v1577 = vsel %vm1529, %v1561, %v1545
    %v1578 = vsel %vm1530, %v1562, %v1546
    %v1579 = vsel %vm1531, %v1563, %v1547
    %v1580 = vsel %vm1532, %v1564, %v1548
    %v1581 = vsel %vm1533, %v1565, %v1549
    %v1582 = vsel %vm1534, %v1566, %v1550
    %v1583 = vsel %vm1535, %v1567, %v1551
    %v1584 = vsel %vm1536, %v1568, %v1552
    %v1585 = vsel %vm1537, %v1569, %v1553
    %v1586 = vsel %vm1538, %v1570, %v1554
    %v1587 = vsel %vm1539, %v1571, %v1555
    %v1588 = vsel %vm1540, %v1572, %v1556
    %1589 = vst [vmem:[#allocation9] sm:$0xff] %v1573
    %1590 = vst [vmem:[#allocation9 + $0x8] sm:$0xff] %v1574
    %1591 = vst [vmem:[#allocation9 + $0x10] sm:$0xff] %v1575
    %1592 = vst [vmem:[#allocation9 + $0x18] sm:$0xff] %v1576
    %1593 = vst [vmem:[#allocation9 + $0x20] sm:$0xff] %v1577
    %1594 = vst [vmem:[#allocation9 + $0x28] sm:$0xff] %v1578
    %1595 = vst [vmem:[#allocation9 + $0x30] sm:$0xff] %v1579
    %1596 = vst [vmem:[#allocation9 + $0x38] sm:$0xff] %v1580
    %1597 = vst [vmem:[#allocation9 + $0x40] sm:$0xff] %v1581
    %1598 = vst [vmem:[#allocation9 + $0x48] sm:$0xff] %v1582
    %1599 = vst [vmem:[#allocation9 + $0x50] sm:$0xff] %v1583
    %1600 = vst [vmem:[#allocation9 + $0x58] sm:$0xff] %v1584
    %1601 = vst [vmem:[#allocation9 + $0x60] sm:$0xff] %v1585
    %1602 = vst [vmem:[#allocation9 + $0x68] sm:$0xff] %v1586
    %1603 = vst [vmem:[#allocation9 + $0x70] sm:$0xff] %v1587
    %1604 = vst [vmem:[#allocation9 + $0x78] sm:$0xff] %v1588
    %v1605 = vld [vmem:[#allocation2] sm:$0xff]
    %v1606 = vld [vmem:[#allocation2 + $0x8] sm:$0xff]
    %v1607 = vld [vmem:[#allocation2 + $0x10] sm:$0xff]
    %v1608 = vld [vmem:[#allocation2 + $0x18] sm:$0xff]
    %v1609 = vld [vmem:[#allocation2 + $0x20] sm:$0xff]
    %v1610 = vld [vmem:[#allocation2 + $0x28] sm:$0xff]
    %v1611 = vld [vmem:[#allocation2 + $0x30] sm:$0xff]
    %v1612 = vld [vmem:[#allocation2 + $0x38] sm:$0xff]
    %v1613 = vld [vmem:[#allocation2 + $0x40] sm:$0xff]
    %v1614 = vld [vmem:[#allocation2 + $0x48] sm:$0xff]
    %v1615 = vld [vmem:[#allocation2 + $0x50] sm:$0xff]
    %v1616 = vld [vmem:[#allocation2 + $0x58] sm:$0xff]
    %v1617 = vld [vmem:[#allocation2 + $0x60] sm:$0xff]
    %v1618 = vld [vmem:[#allocation2 + $0x68] sm:$0xff]
    %v1619 = vld [vmem:[#allocation2 + $0x70] sm:$0xff]
    %v1620 = vld [vmem:[#allocation2 + $0x78] sm:$0xff]
    %1621 = vxpose.xlu0.b32.start [1/16] %v1605, 128
    %1622 = vxpose.xlu0.b32.cont [2/16] %v1606, 128
    %1623 = vxpose.xlu0.b32.cont [3/16] %v1607, 128
    %1624 = vxpose.xlu0.b32.cont [4/16] %v1608, 128
    %1625 = vxpose.xlu0.b32.cont [5/16] %v1609, 128
    %1626 = vxpose.xlu0.b32.cont [6/16] %v1610, 128
    %1627 = vxpose.xlu0.b32.cont [7/16] %v1611, 128
    %1628 = vxpose.xlu0.b32.cont [8/16] %v1612, 128
    %1629 = vxpose.xlu0.b32.cont [9/16] %v1613, 128
    %1630 = vxpose.xlu0.b32.cont [10/16] %v1614, 128
    %1631 = vxpose.xlu0.b32.cont [11/16] %v1615, 128
    %1632 = vxpose.xlu0.b32.cont [12/16] %v1616, 128
    %1633 = vxpose.xlu0.b32.cont [13/16] %v1617, 128
    %1634 = vxpose.xlu0.b32.cont [14/16] %v1618, 128
    %1635 = vxpose.xlu0.b32.cont [15/16] %v1619, 128
    %1636 = vxpose.xlu0.b32.end [16/16] %v1620, 128
    %v1637 = vpop.trf.xlu0
    %v1638 = vpop.trf.xlu0
    %v1639 = vpop.trf.xlu0
    %v1640 = vpop.trf.xlu0
    %v1641 = vpop.trf.xlu0
    %v1642 = vpop.trf.xlu0
    %v1643 = vpop.trf.xlu0
    %v1644 = vpop.trf.xlu0
    %v1645 = vpop.trf.xlu0
    %v1646 = vpop.trf.xlu0
    %v1647 = vpop.trf.xlu0
    %v1648 = vpop.trf.xlu0
    %v1649 = vpop.trf.xlu0
    %v1650 = vpop.trf.xlu0
    %v1651 = vpop.trf.xlu0
    %v1652 = vpop.trf.xlu0
    %v1653 = vsel %vm1525, %v1637, 0.0
    %v1654 = vsel %vm1526, %v1638, 0.0
    %v1655 = vsel %vm1527, %v1639, 0.0
    %v1656 = vsel %vm1528, %v1640, 0.0
    %v1657 = vsel %vm1529, %v1641, 0.0
    %v1658 = vsel %vm1530, %v1642, 0.0
    %v1659 = vsel %vm1531, %v1643, 0.0
    %v1660 = vsel %vm1532, %v1644, 0.0
    %v1661 = vsel %vm1533, %v1645, 0.0
    %v1662 = vsel %vm1534, %v1646, 0.0
    %v1663 = vsel %vm1535, %v1647, 0.0
    %v1664 = vsel %vm1536, %v1648, 0.0
    %v1665 = vsel %vm1537, %v1649, 0.0
    %v1666 = vsel %vm1538, %v1650, 0.0
    %v1667 = vsel %vm1539, %v1651, 0.0
    %v1668 = vsel %vm1540, %v1652, 0.0
    %v1669 = vadd.f32 %v1653, %v1654
    %v1670 = vadd.f32 %v1669, %v1655
    %v1671 = vadd.f32 %v1670, %v1656
    %v1672 = vadd.f32 %v1671, %v1657
    %v1673 = vadd.f32 %v1672, %v1658
    %v1674 = vadd.f32 %v1673, %v1659
    %v1675 = vadd.f32 %v1674, %v1660
    %v1676 = vadd.f32 %v1675, %v1661
    %v1677 = vadd.f32 %v1676, %v1662
    %v1678 = vadd.f32 %v1677, %v1663
    %v1679 = vadd.f32 %v1678, %v1664
    %v1680 = vadd.f32 %v1679, %v1665
    %v1681 = vadd.f32 %v1680, %v1666
    %v1682 = vadd.f32 %v1681, %v1667
    %v1683 = vadd.f32 %v1682, %v1668
    %1684 = vadd.xlane.f32.xlu0 %v1683
    %v1685 = vpop.xlane.xlu0 %1684
    %v1686 = vrot.slane %v1685, 4
    %v1687 = vadd.f32 %v1685, %v1686
    %v1688 = vrot.slane %v1687, 2
    %v1689 = vadd.f32 %v1687, %v1688
    %v1690 = vrot.slane %v1689, 1
    %v1691 = vadd.f32 %v1689, %v1690
    %s1692 = vtos %v1691
    %s1693 = ssub.f32 %s1692, %s178
    %s1694 = scalar_lea.smem [#allocation10], 0
    %1695 = sst [smem:[%s1694]] %s1693
    // Predicated region
    $region26: #{tpu_custom_call.1} parent=1 // pred_check
      _
    $region27: #{tpu_custom_call.1} parent=1 // pred_check_branch
      %1697 = sbr.rel (0) target = $region29
    $region28: #{tpu_custom_call.1} parent=1 // pred_region
      %s1699 = ssub.s32 2048, 2048
      %1700 = vsyncadd [#allocation4], %s1699
      %s1701 = sshll.u32 [#allocation9], 4
      %s1702 = int_to_ptr.vmem [resolvable:$true] %s1701
      %1707 = dma.vmem_to_hbm [thread:$0]  %s1702, 2048, %s3, [#allocation4], 128, 128, 8
    $region29: #{tpu_custom_call.1} parent=1 // pred_fallthru
      _
    // Predicated region
    $region30: #{tpu_custom_call.1} parent=1 // pred_check
      _
    $region31: #{tpu_custom_call.1} parent=1 // pred_check_branch
      %1709 = sbr.rel (0) target = $region33
    $region32: #{tpu_custom_call.1} parent=1 // pred_region
      %s1711 = ssub.s32 16, 16
      %1712 = vsyncadd [#allocation5], %s1711
      %1715 = dma.smem_to_hbm [#allocation10], 16, %s4, [#allocation5]
    $region33: #{tpu_custom_call.1} parent=1 // pred_fallthru
      _
    // Predicated region
    $region34: #{tpu_custom_call.1} parent=1 // pred_check
      _
    $region35: #{tpu_custom_call.1} parent=1 // pred_check_branch
      %1717 = sbr.rel (0) target = $region37
    $region36: #{tpu_custom_call.1} parent=1 // pred_region
      %1718 = dma.done [#allocation4], 2048
    $region37: #{tpu_custom_call.1} parent=1 // pred_fallthru
      _
    // Predicated region
    $region38: #{tpu_custom_call.1} parent=1 // pred_check
      _
    $region39: #{tpu_custom_call.1} parent=1 // pred_check_branch
      %1720 = sbr.rel (0) target = $region41
    $region40: #{tpu_custom_call.1} parent=1 // pred_region
      %1721 = dma.done [#allocation5], 16
    $region41: #{tpu_custom_call.1} parent=1 // pred_fallthru
      _
    %1722 = sfence
    %1723 = vsyncpa [#allocation3], 1
    %1724 = vsyncpa [#allocation7], 1
    %1725 = vsyncpa [#allocation4], 1
    %1726 = vsyncpa [#allocation5], 1

</llo_original>
